<compile_context>
chip_gen: v7x
topology: tpu7x:2x2x1
jax: 0.10.0
libtpu: 0.0.40
codegen_flags: <defaults>
</compile_context>

<pallas_src>
import numpy as np
import jax
import jax.numpy as jnp
from jax import lax
from jax.experimental import pallas as pl
from jax.experimental.pallas import tpu as pltpu

# Small, shape-consistent hyperparameters (tutorial uses 512/2048/64/8).
BATCH   = 2
SEQ     = 8
D_MODEL = 32
D_FF    = 64
D_K     = 8
D_V     = 8
N_HEADS = 4
EPS     = 1e-5          # nn.LayerNorm default eps


def _layernorm(x):
    # nn.LayerNorm(d_model) with default weight=1, bias=0, biased variance (f32).
    mean = jnp.mean(x, axis=-1, keepdims=True)
    var = jnp.mean((x - mean) ** 2, axis=-1, keepdims=True)
    return (x - mean) * lax.rsqrt(var + EPS)


def encoder_layer_kernel(x_ref, mask_ref, wqkv_ref, bqkv_ref, wo_ref, bo_ref,
                         w1_ref, b1_ref, w2_ref, b2_ref, out_ref, attn_ref):
    # x_ref:    (bb*S, D_MODEL) f32    -- bb batch elements folded into rows
    # mask_ref: (bb, S, S)      f32    -- 1.0 => masked_fill_(-1e9)
    # wqkv_ref: (D_MODEL, 2*H*d_k + H*d_v) bf16 (fused Q|K|V),  bqkv: (1, .) f32
    # wo_ref:   (H*d_v, D_MODEL) bf16; w1_ref: (D_MODEL, D_FF) bf16;
    # w2_ref:   (D_FF, D_MODEL)  bf16; biases f32 rows.
    bb = mask_ref.shape[0]
    HK = N_HEADS * D_K

    x = x_ref[...]                             # f32, kept for residual path
    xb = x.astype(jnp.bfloat16)

    # Fused Q|K|V projection: one wide MXU push instead of three narrow ones.
    qkv = jnp.dot(xb, wqkv_ref[...], preferred_element_type=jnp.float32)
    qkv = qkv + bqkv_ref[...]                  # (bb*S, 2*HK + HV), f32

    pad = mask_ref[...] > 0.5                  # (bb, S, S) key-padding mask
    scale = np.float32(1.0 / np.sqrt(D_K))

    ctx_heads = []
    for h in range(N_HEADS):                   # static unroll, H = 4
        # Lane slices (width d_k) + sublane-clean reshape (bb*S -> bb, S).
        q_h = qkv[:, h * D_K:(h + 1) * D_K].reshape(bb, SEQ, D_K)
        k_h = qkv[:, HK + h * D_K:HK + (h + 1) * D_K].reshape(bb, SEQ, D_K)
        v_h = qkv[:, 2 * HK + h * D_V:2 * HK + (h + 1) * D_V].reshape(bb, SEQ, D_V)

        scores = jnp.einsum('bqd,bkd->bqk',
                            q_h.astype(jnp.bfloat16), k_h.astype(jnp.bfloat16),
                            preferred_element_type=jnp.float32) * scale
        scores = jnp.where(pad, jnp.float32(-1e9), scores)

        # numerically stable softmax in f32; reciprocal goes to the EUP slot
        scores = scores - jnp.max(scores, axis=-1, keepdims=True)
        e = jnp.exp(scores)
        attn_w = e * pl.reciprocal(jnp.sum(e, axis=-1, keepdims=True), approx=True)
        attn_ref[:, h, :, :] = attn_w          # (bb, S, S) store per head

        ctx_h = jnp.einsum('bqk,bkd->bqd',
                           attn_w.astype(jnp.bfloat16), v_h.astype(jnp.bfloat16),
                           preferred_element_type=jnp.float32)      # (bb, S, d_v)
        ctx_heads.append(ctx_h.reshape(bb * SEQ, D_V))

    context = jnp.concatenate(ctx_heads, axis=-1)                    # (bb*S, H*d_v)

    # output projection + residual + layernorm
    attn_out = jnp.dot(context.astype(jnp.bfloat16), wo_ref[...],
                       preferred_element_type=jnp.float32) + bo_ref[...]
    y = _layernorm(attn_out + x)

    # position-wise feed-forward (Conv1d k=1 == Linear) + residual + layernorm
    h1 = jnp.maximum(jnp.dot(y.astype(jnp.bfloat16), w1_ref[...],
                             preferred_element_type=jnp.float32) + b1_ref[...], 0.0)
    ffn = jnp.dot(h1.astype(jnp.bfloat16), w2_ref[...],
                  preferred_element_type=jnp.float32) + b2_ref[...]
    out_ref[...] = _layernorm(ffn + y)


def _pick_block_batch():
    # v7x has 2 TensorCores/chip: give each core one batch element.
    # v5e/v6e have 1 TC: fold the whole batch into a single grid step
    # (avoids ~0.35 us fixed per-step pipeline overhead).
    try:
        kind = jax.devices()[0].device_kind.lower()
    except Exception:
        return BATCH
    if "v7" in kind or "7x" in kind:
        return 1
    return BATCH


def encoder_layer(x, mask, params, *, block_batch=None):
    wq, bq, wk, bk, wv, bv, wo, bo, w1, b1, w2, b2 = params
    B, S, D = x.shape
    bb = _pick_block_batch() if block_batch is None else block_batch
    assert B % bb == 0

    HK = N_HEADS * D_K
    HV = N_HEADS * D_V
    QKV = 2 * HK + HV

    # Fuse Q|K|V weights/biases and feed bf16 operands to the MXU (f32 accum).
    wqkv = jnp.concatenate([wq, wk, wv], axis=1).astype(jnp.bfloat16)  # (D, QKV)
    bqkv = jnp.concatenate([bq, bk, bv], axis=1)                       # (1, QKV) f32
    wo_b = wo.astype(jnp.bfloat16)
    w1_b = w1.astype(jnp.bfloat16)
    w2_b = w2.astype(jnp.bfloat16)

    x2d = x.reshape(B * S, D)              # fold batch into matmul M dimension

    out_shape = (
        jax.ShapeDtypeStruct((B * S, D), jnp.float32),               # enc_outputs (flat)
        jax.ShapeDtypeStruct((B, N_HEADS, S, S), jnp.float32),       # attn
    )
    out2d, attn = pl.pallas_call(
        encoder_layer_kernel,
        out_shape=out_shape,
        grid=(B // bb,),
        in_specs=[
            pl.BlockSpec((bb * S, D), lambda i: (i, 0)),              # x rows
            pl.BlockSpec((bb, S, S), lambda i: (i, 0, 0)),            # mask
            pl.BlockSpec((D, QKV), lambda i: (0, 0)),                 # fused W_QKV
            pl.BlockSpec((1, QKV), lambda i: (0, 0)),                 # fused b_QKV
            pl.BlockSpec((HV, D), lambda i: (0, 0)),                  # W_O
            pl.BlockSpec((1, D), lambda i: (0, 0)),                   # b_O
            pl.BlockSpec((D, D_FF), lambda i: (0, 0)),                # FFN W1
            pl.BlockSpec((1, D_FF), lambda i: (0, 0)),                # FFN b1
            pl.BlockSpec((D_FF, D), lambda i: (0, 0)),                # FFN W2
            pl.BlockSpec((1, D), lambda i: (0, 0)),                   # FFN b2
        ],
        out_specs=(
            pl.BlockSpec((bb * S, D), lambda i: (i, 0)),
            pl.BlockSpec((bb, N_HEADS, S, S), lambda i: (i, 0, 0, 0)),
        ),
        compiler_params=pltpu.CompilerParams(dimension_semantics=("parallel",)),
    )(x2d, mask, wqkv, bqkv, wo_b, bo, w1_b, b1, w2_b, b2)

    return out2d.reshape(B, S, D), attn


def encoder_layer_ref(x, mask, params):
    # Pure-JAX reference mirroring the kernel's bf16-operand / f32-accumulate
    # matmul policy (so tolerances stay tight).
    wq, bq, wk, bk, wv, bv, wo, bo, w1, b1, w2, b2 = params
    B, S, D = x.shape

    def mm(a, w, b):
        return jnp.dot(a.astype(jnp.bfloat16), w.astype(jnp.bfloat16),
                       preferred_element_type=jnp.float32) + b

    x2 = x.reshape(B * S, D)
    q = mm(x2, wq, bq).reshape(B, S, N_HEADS, D_K).transpose(0, 2, 1, 3)
    k = mm(x2, wk, bk).reshape(B, S, N_HEADS, D_K).transpose(0, 2, 1, 3)
    v = mm(x2, wv, bv).reshape(B, S, N_HEADS, D_V).transpose(0, 2, 1, 3)

    scores = jnp.einsum('bhqd,bhkd->bhqk',
                        q.astype(jnp.bfloat16), k.astype(jnp.bfloat16),
                        preferred_element_type=jnp.float32) * np.float32(1.0 / np.sqrt(D_K))
    scores = jnp.where(mask[:, None, :, :] > 0.5, jnp.float32(-1e9), scores)
    attn = jax.nn.softmax(scores, axis=-1)

    ctx = jnp.einsum('bhqk,bhkd->bhqd',
                     attn.astype(jnp.bfloat16), v.astype(jnp.bfloat16),
                     preferred_element_type=jnp.float32)
    ctx = ctx.transpose(0, 2, 1, 3).reshape(B * S, N_HEADS * D_V)

    y = _layernorm(mm(ctx, wo, bo) + x2)
    h1 = jnp.maximum(mm(y, w1, b1), 0.0)
    out = _layernorm(mm(h1, w2, b2) + y)
    return out.reshape(B, S, D), attn


def init_params(key):
    # Mimic nn.Linear / nn.Conv1d(kernel_size=1) default uniform init
    # (weight & bias in [-1/sqrt(fan_in), 1/sqrt(fan_in)]), weights stored
    # already transposed as (in_dim, out_dim).
    ks = jax.random.split(key, 12)

    def lin(kw, kb, fan_in, fan_out):
        bound = 1.0 / np.sqrt(fan_in)
        w = jax.random.uniform(kw, (fan_in, fan_out), jnp.float32, -bound, bound)
        b = jax.random.uniform(kb, (1, fan_out), jnp.float32, -bound, bound)
        return w, b

    wq, bq = lin(ks[0], ks[1], D_MODEL, N_HEADS * D_K)
    wk, bk = lin(ks[2], ks[3], D_MODEL, N_HEADS * D_K)
    wv, bv = lin(ks[4], ks[5], D_MODEL, N_HEADS * D_V)
    wo, bo = lin(ks[6], ks[7], N_HEADS * D_V, D_MODEL)
    w1, b1 = lin(ks[8], ks[9], D_MODEL, D_FF)
    w2, b2 = lin(ks[10], ks[11], D_FF, D_MODEL)
    return wq, bq, wk, bk, wv, bv, wo, bo, w1, b1, w2, b2


if __name__ == "__main__":
    key = jax.random.PRNGKey(0)
    k_x, k_p = jax.random.split(key)

    x = jax.random.normal(k_x, (BATCH, SEQ, D_MODEL), jnp.float32)

    # Padding-style self-attention mask: batch 0 has no padding, batch 1 pads
    # the last 2 positions (key columns masked, like get_attn_pad_mask).
    pad = np.zeros((BATCH, SEQ), dtype=np.float32)
    pad[1, -2:] = 1.0
    mask = jnp.asarray(np.broadcast_to(pad[:, None, :], (BATCH, SEQ, SEQ)).copy())

    params = init_params(k_p)

    enc_out, attn = encoder_layer(x, mask, params)
    jax.block_until_ready((enc_out, attn))

    assert enc_out.shape == (BATCH, SEQ, D_MODEL)
    assert attn.shape == (BATCH, N_HEADS, SEQ, SEQ)

    ref_out, ref_attn = encoder_layer_ref(x, mask, params)
    np.testing.assert_allclose(np.asarray(attn), np.asarray(ref_attn),
                               rtol=2e-2, atol=2e-2)
    np.testing.assert_allclose(np.asarray(enc_out), np.asarray(ref_out),
                               rtol=2e-2, atol=2e-2)
    print("KERNEL_OK")
</pallas_src>

<mosaic_0001>
module attributes {stable_mosaic.version = 11 : i64} {
  func.func @encoder_layer_kernel(%arg0: i32, %arg1: memref<16x32xf32, #tpu.memory_space<vmem>>, %arg2: memref<2x8x8xf32, #tpu.memory_space<vmem>>, %arg3: memref<32x96xbf16, #tpu.memory_space<vmem>>, %arg4: memref<1x96xf32, #tpu.memory_space<vmem>>, %arg5: memref<32x32xbf16, #tpu.memory_space<vmem>>, %arg6: memref<1x32xf32, #tpu.memory_space<vmem>>, %arg7: memref<32x64xbf16, #tpu.memory_space<vmem>>, %arg8: memref<1x64xf32, #tpu.memory_space<vmem>>, %arg9: memref<64x32xbf16, #tpu.memory_space<vmem>>, %arg10: memref<1x32xf32, #tpu.memory_space<vmem>>, %arg11: memref<16x32xf32, #tpu.memory_space<vmem>>, %arg12: memref<2x4x8x8xf32, #tpu.memory_space<vmem>>) attributes {dimension_semantics = [#tpu.dimension_semantics<parallel>], iteration_bounds = array<i64: 1>, scalar_prefetch = 0 : i64, scratch_operands = 0 : i64, tpu.core_type = #tpu.core_type<tc>, window_params = [{transform_indices = @transform_0, window_bounds = array<i64: 16, 32>}, {transform_indices = @transform_1, window_bounds = array<i64: 2, 8, 8>}, {pipeline_mode = #tpu.pipeline_mode<synchronous>, transform_indices = @transform_2, window_bounds = array<i64: 32, 96>}, {pipeline_mode = #tpu.pipeline_mode<synchronous>, transform_indices = @transform_3, window_bounds = array<i64: 1, 96>}, {pipeline_mode = #tpu.pipeline_mode<synchronous>, transform_indices = @transform_4, window_bounds = array<i64: 32, 32>}, {pipeline_mode = #tpu.pipeline_mode<synchronous>, transform_indices = @transform_5, window_bounds = array<i64: 1, 32>}, {pipeline_mode = #tpu.pipeline_mode<synchronous>, transform_indices = @transform_6, window_bounds = array<i64: 32, 64>}, {pipeline_mode = #tpu.pipeline_mode<synchronous>, transform_indices = @transform_7, window_bounds = array<i64: 1, 64>}, {pipeline_mode = #tpu.pipeline_mode<synchronous>, transform_indices = @transform_8, window_bounds = array<i64: 64, 32>}, {pipeline_mode = #tpu.pipeline_mode<synchronous>, transform_indices = @transform_9, window_bounds = array<i64: 1, 32>}, {transform_indices = @transform_10, window_bounds = array<i64: 16, 32>}, {transform_indices = @transform_11, window_bounds = array<i64: 2, 4, 8, 8>}]} {
    %c0 = arith.constant 0 : index
    %c0_0 = arith.constant 0 : index
    %0 = vector.load %arg1[%c0, %c0_0] : memref<16x32xf32, #tpu.memory_space<vmem>>, vector<16x32xf32>
    %1 = arith.truncf %0 : vector<16x32xf32> to vector<16x32xbf16>
    %c0_1 = arith.constant 0 : index
    %c0_2 = arith.constant 0 : index
    %2 = vector.load %arg3[%c0_1, %c0_2] : memref<32x96xbf16, #tpu.memory_space<vmem>>, vector<32x96xbf16>
    %cst = arith.constant dense<0.000000e+00> : vector<16x96xf32>
    %3 = tpu.matmul %1, %2, %cst {dimension_numbers = #tpu.dot_dimension_numbers<[1], [0], [0], [1], [0, 0, 1, 1], [], []>} : vector<16x32xbf16>, vector<32x96xbf16>, vector<16x96xf32> -> vector<16x96xf32>
    %c0_3 = arith.constant 0 : index
    %c0_4 = arith.constant 0 : index
    %4 = vector.load %arg4[%c0_3, %c0_4] : memref<1x96xf32, #tpu.memory_space<vmem>>, vector<1x96xf32>
    %5 = vector.broadcast %4 : vector<1x96xf32> to vector<16x96xf32>
    %6 = arith.addf %3, %5 : vector<16x96xf32>
    %c0_5 = arith.constant 0 : index
    %c0_6 = arith.constant 0 : index
    %c0_7 = arith.constant 0 : index
    %7 = vector.load %arg2[%c0_5, %c0_6, %c0_7] : memref<2x8x8xf32, #tpu.memory_space<vmem>>, vector<2x8x8xf32>
    %cst_8 = arith.constant 5.000000e-01 : f32
    %8 = vector.broadcast %cst_8 : f32 to vector<2x8x8xf32>
    %9 = arith.cmpf ogt, %7, %8 : vector<2x8x8xf32>
    %10 = vector.extract_strided_slice %6 {offsets = [0, 0], sizes = [16, 8], strides = [1, 1]} : vector<16x96xf32> to vector<16x8xf32>
    %11 = vector.shape_cast %10 : vector<16x8xf32> to vector<2x8x8xf32>
    %12 = vector.extract_strided_slice %6 {offsets = [0, 32], sizes = [16, 8], strides = [1, 1]} : vector<16x96xf32> to vector<16x8xf32>
    %13 = vector.shape_cast %12 : vector<16x8xf32> to vector<2x8x8xf32>
    %14 = vector.extract_strided_slice %6 {offsets = [0, 64], sizes = [16, 8], strides = [1, 1]} : vector<16x96xf32> to vector<16x8xf32>
    %15 = vector.shape_cast %14 : vector<16x8xf32> to vector<2x8x8xf32>
    %16 = arith.truncf %11 : vector<2x8x8xf32> to vector<2x8x8xbf16>
    %17 = arith.truncf %13 : vector<2x8x8xf32> to vector<2x8x8xbf16>
    "tpu.trace_start"() <{level = 10 : i32, message = "bqd,bkd->bqk"}> : () -> ()
    %cst_9 = arith.constant dense<0.000000e+00> : vector<2x8x8xf32>
    %18 = tpu.matmul %16, %17, %cst_9 {dimension_numbers = #tpu.dot_dimension_numbers<[2], [2], [1], [1], [0, 0, 0, 1, 1, 1], [0], [0]>} : vector<2x8x8xbf16>, vector<2x8x8xbf16>, vector<2x8x8xf32> -> vector<2x8x8xf32>
    "tpu.trace_stop"() : () -> ()
    %cst_10 = arith.constant 0.353553385 : f32
    %19 = vector.broadcast %cst_10 : f32 to vector<2x8x8xf32>
    %20 = arith.mulf %18, %19 : vector<2x8x8xf32>
    %cst_11 = arith.constant -1.000000e+09 : f32
    %21 = vector.broadcast %cst_11 : f32 to vector<2x8x8xf32>
    %22 = arith.select %9, %21, %20 : vector<2x8x8xi1>, vector<2x8x8xf32>
    %cst_12 = arith.constant dense<0xFF800000> : vector<2x8xf32>
    %23 = vector.multi_reduction <maximumf>, %22, %cst_12 [2] : vector<2x8x8xf32> to vector<2x8xf32>
    %24 = vector.shape_cast %23 : vector<2x8xf32> to vector<2x8x1xf32>
    %25 = vector.broadcast %24 : vector<2x8x1xf32> to vector<2x8x8xf32>
    %26 = arith.subf %22, %25 : vector<2x8x8xf32>
    %27 = math.exp %26 : vector<2x8x8xf32>
    %cst_13 = arith.constant dense<0.000000e+00> : vector<2x8xf32>
    %28 = vector.multi_reduction <add>, %27, %cst_13 [2] : vector<2x8x8xf32> to vector<2x8xf32>
    %29 = vector.shape_cast %28 : vector<2x8xf32> to vector<2x8x1xf32>
    %30 = tpu.reciprocal %29 {approx = true} : vector<2x8x1xf32> -> vector<2x8x1xf32>
    %31 = vector.broadcast %30 : vector<2x8x1xf32> to vector<2x8x8xf32>
    %32 = arith.mulf %27, %31 : vector<2x8x8xf32>
    %c0_14 = arith.constant 0 : index
    %c0_15 = arith.constant 0 : index
    %c0_16 = arith.constant 0 : index
    %c0_17 = arith.constant 0 : index
    %33 = vector.load %arg12[%c0_14, %c0_15, %c0_16, %c0_17] : memref<2x4x8x8xf32, #tpu.memory_space<vmem>>, vector<2x1x8x8xf32>
    %34 = vector.shape_cast %33 : vector<2x1x8x8xf32> to vector<2x8x8xf32>
    %35 = vector.shape_cast %32 : vector<2x8x8xf32> to vector<2x1x8x8xf32>
    tpu.vector_store %arg12[%c0_14, %c0_15, %c0_16, %c0_17], %35 {strides = array<i32>} : memref<2x4x8x8xf32, #tpu.memory_space<vmem>>, vector<2x1x8x8xf32>,
    %36 = arith.truncf %32 : vector<2x8x8xf32> to vector<2x8x8xbf16>
    %37 = arith.truncf %15 : vector<2x8x8xf32> to vector<2x8x8xbf16>
    "tpu.trace_start"() <{level = 10 : i32, message = "bqk,bkd->bqd"}> : () -> ()
    %cst_18 = arith.constant dense<0.000000e+00> : vector<2x8x8xf32>
    %38 = tpu.matmul %36, %37, %cst_18 {dimension_numbers = #tpu.dot_dimension_numbers<[2], [1], [1], [2], [0, 0, 0, 1, 1, 2], [0], [0]>} : vector<2x8x8xbf16>, vector<2x8x8xbf16>, vector<2x8x8xf32> -> vector<2x8x8xf32>
    "tpu.trace_stop"() : () -> ()
    %39 = vector.shape_cast %38 : vector<2x8x8xf32> to vector<16x8xf32>
    %40 = vector.extract_strided_slice %6 {offsets = [0, 8], sizes = [16, 8], strides = [1, 1]} : vector<16x96xf32> to vector<16x8xf32>
    %41 = vector.shape_cast %40 : vector<16x8xf32> to vector<2x8x8xf32>
    %42 = vector.extract_strided_slice %6 {offsets = [0, 40], sizes = [16, 8], strides = [1, 1]} : vector<16x96xf32> to vector<16x8xf32>
    %43 = vector.shape_cast %42 : vector<16x8xf32> to vector<2x8x8xf32>
    %44 = vector.extract_strided_slice %6 {offsets = [0, 72], sizes = [16, 8], strides = [1, 1]} : vector<16x96xf32> to vector<16x8xf32>
    %45 = vector.shape_cast %44 : vector<16x8xf32> to vector<2x8x8xf32>
    %46 = arith.truncf %41 : vector<2x8x8xf32> to vector<2x8x8xbf16>
    %47 = arith.truncf %43 : vector<2x8x8xf32> to vector<2x8x8xbf16>
    "tpu.trace_start"() <{level = 10 : i32, message = "bqd,bkd->bqk"}> : () -> ()
    %cst_19 = arith.constant dense<0.000000e+00> : vector<2x8x8xf32>
    %48 = tpu.matmul %46, %47, %cst_19 {dimension_numbers = #tpu.dot_dimension_numbers<[2], [2], [1], [1], [0, 0, 0, 1, 1, 1], [0], [0]>} : vector<2x8x8xbf16>, vector<2x8x8xbf16>, vector<2x8x8xf32> -> vector<2x8x8xf32>
    "tpu.trace_stop"() : () -> ()
    %cst_20 = arith.constant 0.353553385 : f32
    %49 = vector.broadcast %cst_20 : f32 to vector<2x8x8xf32>
    %50 = arith.mulf %48, %49 : vector<2x8x8xf32>
    %cst_21 = arith.constant -1.000000e+09 : f32
    %51 = vector.broadcast %cst_21 : f32 to vector<2x8x8xf32>
    %52 = arith.select %9, %51, %50 : vector<2x8x8xi1>, vector<2x8x8xf32>
    %cst_22 = arith.constant dense<0xFF800000> : vector<2x8xf32>
    %53 = vector.multi_reduction <maximumf>, %52, %cst_22 [2] : vector<2x8x8xf32> to vector<2x8xf32>
    %54 = vector.shape_cast %53 : vector<2x8xf32> to vector<2x8x1xf32>
    %55 = vector.broadcast %54 : vector<2x8x1xf32> to vector<2x8x8xf32>
    %56 = arith.subf %52, %55 : vector<2x8x8xf32>
    %57 = math.exp %56 : vector<2x8x8xf32>
    %cst_23 = arith.constant dense<0.000000e+00> : vector<2x8xf32>
    %58 = vector.multi_reduction <add>, %57, %cst_23 [2] : vector<2x8x8xf32> to vector<2x8xf32>
    %59 = vector.shape_cast %58 : vector<2x8xf32> to vector<2x8x1xf32>
    %60 = tpu.reciprocal %59 {approx = true} : vector<2x8x1xf32> -> vector<2x8x1xf32>
    %61 = vector.broadcast %60 : vector<2x8x1xf32> to vector<2x8x8xf32>
    %62 = arith.mulf %57, %61 : vector<2x8x8xf32>
    %c0_24 = arith.constant 0 : index
    %c1 = arith.constant 1 : index
    %c0_25 = arith.constant 0 : index
    %c0_26 = arith.constant 0 : index
    %63 = vector.load %arg12[%c0_24, %c1, %c0_25, %c0_26] : memref<2x4x8x8xf32, #tpu.memory_space<vmem>>, vector<2x1x8x8xf32>
    %64 = vector.shape_cast %63 : vector<2x1x8x8xf32> to vector<2x8x8xf32>
    %65 = vector.shape_cast %62 : vector<2x8x8xf32> to vector<2x1x8x8xf32>
    tpu.vector_store %arg12[%c0_24, %c1, %c0_25, %c0_26], %65 {strides = array<i32>} : memref<2x4x8x8xf32, #tpu.memory_space<vmem>>, vector<2x1x8x8xf32>,
    %66 = arith.truncf %62 : vector<2x8x8xf32> to vector<2x8x8xbf16>
    %67 = arith.truncf %45 : vector<2x8x8xf32> to vector<2x8x8xbf16>
    "tpu.trace_start"() <{level = 10 : i32, message = "bqk,bkd->bqd"}> : () -> ()
    %cst_27 = arith.constant dense<0.000000e+00> : vector<2x8x8xf32>
    %68 = tpu.matmul %66, %67, %cst_27 {dimension_numbers = #tpu.dot_dimension_numbers<[2], [1], [1], [2], [0, 0, 0, 1, 1, 2], [0], [0]>} : vector<2x8x8xbf16>, vector<2x8x8xbf16>, vector<2x8x8xf32> -> vector<2x8x8xf32>
    "tpu.trace_stop"() : () -> ()
    %69 = vector.shape_cast %68 : vector<2x8x8xf32> to vector<16x8xf32>
    %70 = vector.extract_strided_slice %6 {offsets = [0, 16], sizes = [16, 8], strides = [1, 1]} : vector<16x96xf32> to vector<16x8xf32>
    %71 = vector.shape_cast %70 : vector<16x8xf32> to vector<2x8x8xf32>
    %72 = vector.extract_strided_slice %6 {offsets = [0, 48], sizes = [16, 8], strides = [1, 1]} : vector<16x96xf32> to vector<16x8xf32>
    %73 = vector.shape_cast %72 : vector<16x8xf32> to vector<2x8x8xf32>
    %74 = vector.extract_strided_slice %6 {offsets = [0, 80], sizes = [16, 8], strides = [1, 1]} : vector<16x96xf32> to vector<16x8xf32>
    %75 = vector.shape_cast %74 : vector<16x8xf32> to vector<2x8x8xf32>
    %76 = arith.truncf %71 : vector<2x8x8xf32> to vector<2x8x8xbf16>
    %77 = arith.truncf %73 : vector<2x8x8xf32> to vector<2x8x8xbf16>
    "tpu.trace_start"() <{level = 10 : i32, message = "bqd,bkd->bqk"}> : () -> ()
    %cst_28 = arith.constant dense<0.000000e+00> : vector<2x8x8xf32>
    %78 = tpu.matmul %76, %77, %cst_28 {dimension_numbers = #tpu.dot_dimension_numbers<[2], [2], [1], [1], [0, 0, 0, 1, 1, 1], [0], [0]>} : vector<2x8x8xbf16>, vector<2x8x8xbf16>, vector<2x8x8xf32> -> vector<2x8x8xf32>
    "tpu.trace_stop"() : () -> ()
    %cst_29 = arith.constant 0.353553385 : f32
    %79 = vector.broadcast %cst_29 : f32 to vector<2x8x8xf32>
    %80 = arith.mulf %78, %79 : vector<2x8x8xf32>
    %cst_30 = arith.constant -1.000000e+09 : f32
    %81 = vector.broadcast %cst_30 : f32 to vector<2x8x8xf32>
    %82 = arith.select %9, %81, %80 : vector<2x8x8xi1>, vector<2x8x8xf32>
    %cst_31 = arith.constant dense<0xFF800000> : vector<2x8xf32>
    %83 = vector.multi_reduction <maximumf>, %82, %cst_31 [2] : vector<2x8x8xf32> to vector<2x8xf32>
    %84 = vector.shape_cast %83 : vector<2x8xf32> to vector<2x8x1xf32>
    %85 = vector.broadcast %84 : vector<2x8x1xf32> to vector<2x8x8xf32>
    %86 = arith.subf %82, %85 : vector<2x8x8xf32>
    %87 = math.exp %86 : vector<2x8x8xf32>
    %cst_32 = arith.constant dense<0.000000e+00> : vector<2x8xf32>
    %88 = vector.multi_reduction <add>, %87, %cst_32 [2] : vector<2x8x8xf32> to vector<2x8xf32>
    %89 = vector.shape_cast %88 : vector<2x8xf32> to vector<2x8x1xf32>
    %90 = tpu.reciprocal %89 {approx = true} : vector<2x8x1xf32> -> vector<2x8x1xf32>
    %91 = vector.broadcast %90 : vector<2x8x1xf32> to vector<2x8x8xf32>
    %92 = arith.mulf %87, %91 : vector<2x8x8xf32>
    %c0_33 = arith.constant 0 : index
    %c2 = arith.constant 2 : index
    %c0_34 = arith.constant 0 : index
    %c0_35 = arith.constant 0 : index
    %93 = vector.load %arg12[%c0_33, %c2, %c0_34, %c0_35] : memref<2x4x8x8xf32, #tpu.memory_space<vmem>>, vector<2x1x8x8xf32>
    %94 = vector.shape_cast %93 : vector<2x1x8x8xf32> to vector<2x8x8xf32>
    %95 = vector.shape_cast %92 : vector<2x8x8xf32> to vector<2x1x8x8xf32>
    tpu.vector_store %arg12[%c0_33, %c2, %c0_34, %c0_35], %95 {strides = array<i32>} : memref<2x4x8x8xf32, #tpu.memory_space<vmem>>, vector<2x1x8x8xf32>,
    %96 = arith.truncf %92 : vector<2x8x8xf32> to vector<2x8x8xbf16>
    %97 = arith.truncf %75 : vector<2x8x8xf32> to vector<2x8x8xbf16>
    "tpu.trace_start"() <{level = 10 : i32, message = "bqk,bkd->bqd"}> : () -> ()
    %cst_36 = arith.constant dense<0.000000e+00> : vector<2x8x8xf32>
    %98 = tpu.matmul %96, %97, %cst_36 {dimension_numbers = #tpu.dot_dimension_numbers<[2], [1], [1], [2], [0, 0, 0, 1, 1, 2], [0], [0]>} : vector<2x8x8xbf16>, vector<2x8x8xbf16>, vector<2x8x8xf32> -> vector<2x8x8xf32>
    "tpu.trace_stop"() : () -> ()
    %99 = vector.shape_cast %98 : vector<2x8x8xf32> to vector<16x8xf32>
    %100 = vector.extract_strided_slice %6 {offsets = [0, 24], sizes = [16, 8], strides = [1, 1]} : vector<16x96xf32> to vector<16x8xf32>
    %101 = vector.shape_cast %100 : vector<16x8xf32> to vector<2x8x8xf32>
    %102 = vector.extract_strided_slice %6 {offsets = [0, 56], sizes = [16, 8], strides = [1, 1]} : vector<16x96xf32> to vector<16x8xf32>
    %103 = vector.shape_cast %102 : vector<16x8xf32> to vector<2x8x8xf32>
    %104 = vector.extract_strided_slice %6 {offsets = [0, 88], sizes = [16, 8], strides = [1, 1]} : vector<16x96xf32> to vector<16x8xf32>
    %105 = vector.shape_cast %104 : vector<16x8xf32> to vector<2x8x8xf32>
    %106 = arith.truncf %101 : vector<2x8x8xf32> to vector<2x8x8xbf16>
    %107 = arith.truncf %103 : vector<2x8x8xf32> to vector<2x8x8xbf16>
    "tpu.trace_start"() <{level = 10 : i32, message = "bqd,bkd->bqk"}> : () -> ()
    %cst_37 = arith.constant dense<0.000000e+00> : vector<2x8x8xf32>
    %108 = tpu.matmul %106, %107, %cst_37 {dimension_numbers = #tpu.dot_dimension_numbers<[2], [2], [1], [1], [0, 0, 0, 1, 1, 1], [0], [0]>} : vector<2x8x8xbf16>, vector<2x8x8xbf16>, vector<2x8x8xf32> -> vector<2x8x8xf32>
    "tpu.trace_stop"() : () -> ()
    %cst_38 = arith.constant 0.353553385 : f32
    %109 = vector.broadcast %cst_38 : f32 to vector<2x8x8xf32>
    %110 = arith.mulf %108, %109 : vector<2x8x8xf32>
    %cst_39 = arith.constant -1.000000e+09 : f32
    %111 = vector.broadcast %cst_39 : f32 to vector<2x8x8xf32>
    %112 = arith.select %9, %111, %110 : vector<2x8x8xi1>, vector<2x8x8xf32>
    %cst_40 = arith.constant dense<0xFF800000> : vector<2x8xf32>
    %113 = vector.multi_reduction <maximumf>, %112, %cst_40 [2] : vector<2x8x8xf32> to vector<2x8xf32>
    %114 = vector.shape_cast %113 : vector<2x8xf32> to vector<2x8x1xf32>
    %115 = vector.broadcast %114 : vector<2x8x1xf32> to vector<2x8x8xf32>
    %116 = arith.subf %112, %115 : vector<2x8x8xf32>
    %117 = math.exp %116 : vector<2x8x8xf32>
    %cst_41 = arith.constant dense<0.000000e+00> : vector<2x8xf32>
    %118 = vector.multi_reduction <add>, %117, %cst_41 [2] : vector<2x8x8xf32> to vector<2x8xf32>
    %119 = vector.shape_cast %118 : vector<2x8xf32> to vector<2x8x1xf32>
    %120 = tpu.reciprocal %119 {approx = true} : vector<2x8x1xf32> -> vector<2x8x1xf32>
    %121 = vector.broadcast %120 : vector<2x8x1xf32> to vector<2x8x8xf32>
    %122 = arith.mulf %117, %121 : vector<2x8x8xf32>
    %c0_42 = arith.constant 0 : index
    %c3 = arith.constant 3 : index
    %c0_43 = arith.constant 0 : index
    %c0_44 = arith.constant 0 : index
    %123 = vector.load %arg12[%c0_42, %c3, %c0_43, %c0_44] : memref<2x4x8x8xf32, #tpu.memory_space<vmem>>, vector<2x1x8x8xf32>
    %124 = vector.shape_cast %123 : vector<2x1x8x8xf32> to vector<2x8x8xf32>
    %125 = vector.shape_cast %122 : vector<2x8x8xf32> to vector<2x1x8x8xf32>
    tpu.vector_store %arg12[%c0_42, %c3, %c0_43, %c0_44], %125 {strides = array<i32>} : memref<2x4x8x8xf32, #tpu.memory_space<vmem>>, vector<2x1x8x8xf32>,
    %126 = arith.truncf %122 : vector<2x8x8xf32> to vector<2x8x8xbf16>
    %127 = arith.truncf %105 : vector<2x8x8xf32> to vector<2x8x8xbf16>
    "tpu.trace_start"() <{level = 10 : i32, message = "bqk,bkd->bqd"}> : () -> ()
    %cst_45 = arith.constant dense<0.000000e+00> : vector<2x8x8xf32>
    %128 = tpu.matmul %126, %127, %cst_45 {dimension_numbers = #tpu.dot_dimension_numbers<[2], [1], [1], [2], [0, 0, 0, 1, 1, 2], [0], [0]>} : vector<2x8x8xbf16>, vector<2x8x8xbf16>, vector<2x8x8xf32> -> vector<2x8x8xf32>
    "tpu.trace_stop"() : () -> ()
    %129 = vector.shape_cast %128 : vector<2x8x8xf32> to vector<16x8xf32>
    %130 = tpu.concatenate %39, %69, %99, %129 in 1 : vector<16x8xf32>, vector<16x8xf32>, vector<16x8xf32>, vector<16x8xf32> -> vector<16x32xf32>
    %131 = arith.truncf %130 : vector<16x32xf32> to vector<16x32xbf16>
    %c0_46 = arith.constant 0 : index
    %c0_47 = arith.constant 0 : index
    %132 = vector.load %arg5[%c0_46, %c0_47] : memref<32x32xbf16, #tpu.memory_space<vmem>>, vector<32x32xbf16>
    %cst_48 = arith.constant dense<0.000000e+00> : vector<16x32xf32>
    %133 = tpu.matmul %131, %132, %cst_48 {dimension_numbers = #tpu.dot_dimension_numbers<[1], [0], [0], [1], [0, 0, 1, 1], [], []>} : vector<16x32xbf16>, vector<32x32xbf16>, vector<16x32xf32> -> vector<16x32xf32>
    %c0_49 = arith.constant 0 : index
    %c0_50 = arith.constant 0 : index
    %134 = vector.load %arg6[%c0_49, %c0_50] : memref<1x32xf32, #tpu.memory_space<vmem>>, vector<1x32xf32>
    %135 = vector.broadcast %134 : vector<1x32xf32> to vector<16x32xf32>
    %136 = arith.addf %133, %135 : vector<16x32xf32>
    %137 = arith.addf %136, %0 : vector<16x32xf32>
    %cst_51 = arith.constant dense<0.000000e+00> : vector<16xf32>
    %138 = vector.multi_reduction <add>, %137, %cst_51 [1] : vector<16x32xf32> to vector<16xf32>
    %139 = vector.shape_cast %138 : vector<16xf32> to vector<16x1xf32>
    %cst_52 = arith.constant 3.200000e+01 : f32
    %140 = vector.broadcast %cst_52 : f32 to vector<16x1xf32>
    %141 = arith.divf %139, %140 : vector<16x1xf32>
    %142 = vector.broadcast %141 : vector<16x1xf32> to vector<16x32xf32>
    %143 = arith.subf %137, %142 : vector<16x32xf32>
    %144 = arith.mulf %143, %143 : vector<16x32xf32>
    %cst_53 = arith.constant dense<0.000000e+00> : vector<16xf32>
    %145 = vector.multi_reduction <add>, %144, %cst_53 [1] : vector<16x32xf32> to vector<16xf32>
    %146 = vector.shape_cast %145 : vector<16xf32> to vector<16x1xf32>
    %cst_54 = arith.constant 3.200000e+01 : f32
    %147 = vector.broadcast %cst_54 : f32 to vector<16x1xf32>
    %148 = arith.divf %146, %147 : vector<16x1xf32>
    %149 = vector.broadcast %141 : vector<16x1xf32> to vector<16x32xf32>
    %150 = arith.subf %137, %149 : vector<16x32xf32>
    %cst_55 = arith.constant 9.99999974E-6 : f32
    %151 = vector.broadcast %cst_55 : f32 to vector<16x1xf32>
    %152 = arith.addf %148, %151 : vector<16x1xf32>
    %153 = math.rsqrt %152 : vector<16x1xf32>
    %154 = vector.broadcast %153 : vector<16x1xf32> to vector<16x32xf32>
    %155 = arith.mulf %150, %154 : vector<16x32xf32>
    %156 = arith.truncf %155 : vector<16x32xf32> to vector<16x32xbf16>
    %c0_56 = arith.constant 0 : index
    %c0_57 = arith.constant 0 : index
    %157 = vector.load %arg7[%c0_56, %c0_57] : memref<32x64xbf16, #tpu.memory_space<vmem>>, vector<32x64xbf16>
    %cst_58 = arith.constant dense<0.000000e+00> : vector<16x64xf32>
    %158 = tpu.matmul %156, %157, %cst_58 {dimension_numbers = #tpu.dot_dimension_numbers<[1], [0], [0], [1], [0, 0, 1, 1], [], []>} : vector<16x32xbf16>, vector<32x64xbf16>, vector<16x64xf32> -> vector<16x64xf32>
    %c0_59 = arith.constant 0 : index
    %c0_60 = arith.constant 0 : index
    %159 = vector.load %arg8[%c0_59, %c0_60] : memref<1x64xf32, #tpu.memory_space<vmem>>, vector<1x64xf32>
    %160 = vector.broadcast %159 : vector<1x64xf32> to vector<16x64xf32>
    %161 = arith.addf %158, %160 : vector<16x64xf32>
    %cst_61 = arith.constant 0.000000e+00 : f32
    %162 = vector.broadcast %cst_61 : f32 to vector<16x64xf32>
    %163 = arith.maximumf %161, %162 : vector<16x64xf32>
    %164 = arith.truncf %163 : vector<16x64xf32> to vector<16x64xbf16>
    %c0_62 = arith.constant 0 : index
    %c0_63 = arith.constant 0 : index
    %165 = vector.load %arg9[%c0_62, %c0_63] : memref<64x32xbf16, #tpu.memory_space<vmem>>, vector<64x32xbf16>
    %cst_64 = arith.constant dense<0.000000e+00> : vector<16x32xf32>
    %166 = tpu.matmul %164, %165, %cst_64 {dimension_numbers = #tpu.dot_dimension_numbers<[1], [0], [0], [1], [0, 0, 1, 1], [], []>} : vector<16x64xbf16>, vector<64x32xbf16>, vector<16x32xf32> -> vector<16x32xf32>
    %c0_65 = arith.constant 0 : index
    %c0_66 = arith.constant 0 : index
    %167 = vector.load %arg10[%c0_65, %c0_66] : memref<1x32xf32, #tpu.memory_space<vmem>>, vector<1x32xf32>
    %168 = vector.broadcast %167 : vector<1x32xf32> to vector<16x32xf32>
    %169 = arith.addf %166, %168 : vector<16x32xf32>
    %170 = arith.addf %169, %155 : vector<16x32xf32>
    %cst_67 = arith.constant dense<0.000000e+00> : vector<16xf32>
    %171 = vector.multi_reduction <add>, %170, %cst_67 [1] : vector<16x32xf32> to vector<16xf32>
    %172 = vector.shape_cast %171 : vector<16xf32> to vector<16x1xf32>
    %cst_68 = arith.constant 3.200000e+01 : f32
    %173 = vector.broadcast %cst_68 : f32 to vector<16x1xf32>
    %174 = arith.divf %172, %173 : vector<16x1xf32>
    %175 = vector.broadcast %174 : vector<16x1xf32> to vector<16x32xf32>
    %176 = arith.subf %170, %175 : vector<16x32xf32>
    %177 = arith.mulf %176, %176 : vector<16x32xf32>
    %cst_69 = arith.constant dense<0.000000e+00> : vector<16xf32>
    %178 = vector.multi_reduction <add>, %177, %cst_69 [1] : vector<16x32xf32> to vector<16xf32>
    %179 = vector.shape_cast %178 : vector<16xf32> to vector<16x1xf32>
    %cst_70 = arith.constant 3.200000e+01 : f32
    %180 = vector.broadcast %cst_70 : f32 to vector<16x1xf32>
    %181 = arith.divf %179, %180 : vector<16x1xf32>
    %182 = vector.broadcast %174 : vector<16x1xf32> to vector<16x32xf32>
    %183 = arith.subf %170, %182 : vector<16x32xf32>
    %cst_71 = arith.constant 9.99999974E-6 : f32
    %184 = vector.broadcast %cst_71 : f32 to vector<16x1xf32>
    %185 = arith.addf %181, %184 : vector<16x1xf32>
    %186 = math.rsqrt %185 : vector<16x1xf32>
    %187 = vector.broadcast %186 : vector<16x1xf32> to vector<16x32xf32>
    %188 = arith.mulf %183, %187 : vector<16x32xf32>
    %c0_72 = arith.constant 0 : index
    %c0_73 = arith.constant 0 : index
    %189 = vector.load %arg11[%c0_72, %c0_73] : memref<16x32xf32, #tpu.memory_space<vmem>>, vector<16x32xf32>
    tpu.vector_store %arg11[%c0_72, %c0_73], %188 {strides = array<i32>} : memref<16x32xf32, #tpu.memory_space<vmem>>, vector<16x32xf32>,
    return
  }
  func.func @transform_0(%arg0: i32) -> (i32, i32) {
    %c0_i32 = arith.constant 0 : i32
    %c0_i32_0 = arith.constant 0 : i32
    return %arg0, %c0_i32 : i32, i32
  }
  func.func @transform_1(%arg0: i32) -> (i32, i32, i32) {
    %c0_i32 = arith.constant 0 : i32
    %c0_i32_0 = arith.constant 0 : i32
    %c0_i32_1 = arith.constant 0 : i32
    return %arg0, %c0_i32, %c0_i32_0 : i32, i32, i32
  }
  func.func @transform_2(%arg0: i32) -> (i32, i32) {
    %c0_i32 = arith.constant 0 : i32
    %c0_i32_0 = arith.constant 0 : i32
    %c0_i32_1 = arith.constant 0 : i32
    return %c0_i32, %c0_i32_0 : i32, i32
  }
  func.func @transform_3(%arg0: i32) -> (i32, i32) {
    %c0_i32 = arith.constant 0 : i32
    %c0_i32_0 = arith.constant 0 : i32
    %c0_i32_1 = arith.constant 0 : i32
    return %c0_i32, %c0_i32_0 : i32, i32
  }
  func.func @transform_4(%arg0: i32) -> (i32, i32) {
    %c0_i32 = arith.constant 0 : i32
    %c0_i32_0 = arith.constant 0 : i32
    %c0_i32_1 = arith.constant 0 : i32
    return %c0_i32, %c0_i32_0 : i32, i32
  }
  func.func @transform_5(%arg0: i32) -> (i32, i32) {
    %c0_i32 = arith.constant 0 : i32
    %c0_i32_0 = arith.constant 0 : i32
    %c0_i32_1 = arith.constant 0 : i32
    return %c0_i32, %c0_i32_0 : i32, i32
  }
  func.func @transform_6(%arg0: i32) -> (i32, i32) {
    %c0_i32 = arith.constant 0 : i32
    %c0_i32_0 = arith.constant 0 : i32
    %c0_i32_1 = arith.constant 0 : i32
    return %c0_i32, %c0_i32_0 : i32, i32
  }
  func.func @transform_7(%arg0: i32) -> (i32, i32) {
    %c0_i32 = arith.constant 0 : i32
    %c0_i32_0 = arith.constant 0 : i32
    %c0_i32_1 = arith.constant 0 : i32
    return %c0_i32, %c0_i32_0 : i32, i32
  }
  func.func @transform_8(%arg0: i32) -> (i32, i32) {
    %c0_i32 = arith.constant 0 : i32
    %c0_i32_0 = arith.constant 0 : i32
    %c0_i32_1 = arith.constant 0 : i32
    return %c0_i32, %c0_i32_0 : i32, i32
  }
  func.func @transform_9(%arg0: i32) -> (i32, i32) {
    %c0_i32 = arith.constant 0 : i32
    %c0_i32_0 = arith.constant 0 : i32
    %c0_i32_1 = arith.constant 0 : i32
    return %c0_i32, %c0_i32_0 : i32, i32
  }
  func.func @transform_10(%arg0: i32) -> (i32, i32) {
    %c0_i32 = arith.constant 0 : i32
    %c0_i32_0 = arith.constant 0 : i32
    return %arg0, %c0_i32 : i32, i32
  }
  func.func @transform_11(%arg0: i32) -> (i32, i32, i32, i32) {
    %c0_i32 = arith.constant 0 : i32
    %c0_i32_0 = arith.constant 0 : i32
    %c0_i32_1 = arith.constant 0 : i32
    %c0_i32_2 = arith.constant 0 : i32
    return %arg0, %c0_i32, %c0_i32_0, %c0_i32_1 : i32, i32, i32, i32
  }
}

</mosaic_0001>

<llo_original>
// kernel: tpu_custom_call.1
$region0: #{tpu_custom_call.1}
  #allocation0 [shape = 'u32[]', space=smem, size = 0x4, offset = 0x4, fixed_abs, tag = 'smem constant byte address 0x4 - core index']
  #allocation1 [shape = 'u32[144,128]{1,0:T(1,128)}', space=vmem, size = 0x12000, scoped, tag = 'internal scratch']
  %s0 = inlined_call_operand.vmem [shape: f32[16,32], index: 0, kind: input, shape index: {}]
  %s1 = inlined_call_operand.vmem [shape: f32[2,8,8], index: 1, kind: input, shape index: {}]
  %s2 = inlined_call_operand.vmem [shape: bf16[32,96], index: 2, kind: input, shape index: {}]
  %s3 = inlined_call_operand.vmem [shape: f32[1,96], index: 3, kind: input, shape index: {}]
  %s4 = inlined_call_operand.hbm [shape: bf16[32,32], index: 4, kind: input, shape index: {}]
  %s5 = inlined_call_operand.vmem [shape: f32[1,32], index: 5, kind: input, shape index: {}]
  %s6 = inlined_call_operand.hbm [shape: bf16[32,64], index: 6, kind: input, shape index: {}]
  %s7 = inlined_call_operand.vmem [shape: f32[1,64], index: 7, kind: input, shape index: {}]
  %s8 = inlined_call_operand.vmem [shape: bf16[64,32], index: 8, kind: input, shape index: {}]
  %s9 = inlined_call_operand.vmem [shape: f32[1,32], index: 9, kind: input, shape index: {}]
  %s10 = inlined_call_operand.hbm [shape: f32[16,32], index: 10, kind: output, shape index: {0}]
  %s11 = inlined_call_operand.hbm [shape: f32[2,4,8,8], index: 11, kind: output, shape index: {1}]
  %12 = xla_tuple %s10, %s11
  %s13 = sld [smem:[#allocation0]]
  $region66: #{tpu_custom_call.1} parent=0
    _
  %s15 = ssub.s32 1, %s13
  %s16 = scalar_select 0, %s15, %s13
  $region1: #{tpu_custom_call.1} parent=0
    #allocation2 [shape = 'u8[8192]{0}', space=vmem, size = 0x2000, scoped, tag = 'input window, operand 4, single buffered']
    #allocation3 [shape = 's32[1]{0}', space=sflag, size = 0x4, scoped, tag = 'scoped memory for tpu_custom_call.1']
    #allocation4 [shape = 's32[1]{0}', space=sflag, size = 0x4, scoped, tag = 'scoped memory for tpu_custom_call.1']
    #allocation5 [shape = 'u8[8192]{0}', space=vmem, size = 0x2000, scoped, tag = 'input window, operand 6, single buffered']
    #allocation6 [shape = 's32[1]{0}', space=sflag, size = 0x4, scoped, tag = 'scoped memory for tpu_custom_call.1']
    #allocation7 [shape = 'u8[8192]{0}', space=vmem, size = 0x2000, scoped, tag = 'output window, operand 0, single buffered']
    #allocation8 [shape = 'u8[32768]{0}', space=vmem, size = 0x8000, scoped, tag = 'output window, operand 1, single buffered']
    #allocation9 [shape = 's32[1]{0}', space=sflag, size = 0x4, scoped, tag = 'scoped memory for tpu_custom_call.1']
    %17 = vsyncpa [#allocation3], 0
    %18 = vsyncpa [#allocation6], 0
    %19 = vsyncpa [#allocation4], 0
    %20 = vsyncpa [#allocation9], 0
    // Predicated region
    $region2: #{tpu_custom_call.1} parent=1 // pred_check
      _
    $region3: #{tpu_custom_call.1} parent=1 // pred_check_branch
      %22 = sbr.rel (0) target = $region5
    $region4: #{tpu_custom_call.1} parent=1 // pred_region
      _
    $region5: #{tpu_custom_call.1} parent=1 // pred_fallthru
      _
    // Predicated region
    $region6: #{tpu_custom_call.1} parent=1 // pred_check
      _
    $region7: #{tpu_custom_call.1} parent=1 // pred_check_branch
      %24 = sbr.rel (0) target = $region9
    $region8: #{tpu_custom_call.1} parent=1 // pred_region
      _
    $region9: #{tpu_custom_call.1} parent=1 // pred_fallthru
      _
    // Predicated region
    $region10: #{tpu_custom_call.1} parent=1 // pred_check
      _
    $region11: #{tpu_custom_call.1} parent=1 // pred_check_branch
      %26 = sbr.rel (0) target = $region13
    $region12: #{tpu_custom_call.1} parent=1 // pred_region
      _
    $region13: #{tpu_custom_call.1} parent=1 // pred_fallthru
      _
    // Predicated region
    $region14: #{tpu_custom_call.1} parent=1 // pred_check
      _
    $region15: #{tpu_custom_call.1} parent=1 // pred_check_branch
      %28 = sbr.rel (0) target = $region17
    $region16: #{tpu_custom_call.1} parent=1 // pred_region
      _
    $region17: #{tpu_custom_call.1} parent=1 // pred_fallthru
      _
    // Predicated region
    $region18: #{tpu_custom_call.1} parent=1 // pred_check
      _
    $region19: #{tpu_custom_call.1} parent=1 // pred_check_branch
      %30 = sbr.rel (0) target = $region21
    $region20: #{tpu_custom_call.1} parent=1 // pred_region
      %s32 = ssub.s32 256, 256
      %33 = vsyncadd [#allocation3], %s32
      %s34 = sshll.u32 [#allocation2], 4
      %s35 = int_to_ptr.vmem [resolvable:$true] %s34
      %40 = dma.hbm_to_vmem [thread:$0]  %s4, 256, %s35, [#allocation3], 64, 64, 4
    $region21: #{tpu_custom_call.1} parent=1 // pred_fallthru
      _
    // Predicated region
    $region22: #{tpu_custom_call.1} parent=1 // pred_check
      _
    $region23: #{tpu_custom_call.1} parent=1 // pred_check_branch
      %42 = sbr.rel (0) target = $region25
    $region24: #{tpu_custom_call.1} parent=1 // pred_region
      _
    $region25: #{tpu_custom_call.1} parent=1 // pred_fallthru
      _
    // Predicated region
    $region26: #{tpu_custom_call.1} parent=1 // pred_check
      _
    $region27: #{tpu_custom_call.1} parent=1 // pred_check_branch
      %44 = sbr.rel (0) target = $region29
    $region28: #{tpu_custom_call.1} parent=1 // pred_region
      %s46 = ssub.s32 256, 256
      %47 = vsyncadd [#allocation6], %s46
      %s48 = sshll.u32 [#allocation5], 4
      %s49 = int_to_ptr.vmem [resolvable:$true] %s48
      %54 = dma.hbm_to_vmem [thread:$0]  %s6, 256, %s49, [#allocation6], 64, 64, 4
    $region29: #{tpu_custom_call.1} parent=1 // pred_fallthru
      _
    // Predicated region
    $region30: #{tpu_custom_call.1} parent=1 // pred_check
      _
    $region31: #{tpu_custom_call.1} parent=1 // pred_check_branch
      %56 = sbr.rel (0) target = $region33
    $region32: #{tpu_custom_call.1} parent=1 // pred_region
      _
    $region33: #{tpu_custom_call.1} parent=1 // pred_fallthru
      _
    // Predicated region
    $region34: #{tpu_custom_call.1} parent=1 // pred_check
      _
    $region35: #{tpu_custom_call.1} parent=1 // pred_check_branch
      %58 = sbr.rel (0) target = $region37
    $region36: #{tpu_custom_call.1} parent=1 // pred_region
      _
    $region37: #{tpu_custom_call.1} parent=1 // pred_fallthru
      _
    // Predicated region
    $region38: #{tpu_custom_call.1} parent=1 // pred_check
      _
    $region39: #{tpu_custom_call.1} parent=1 // pred_check_branch
      %60 = sbr.rel (0) target = $region41
    $region40: #{tpu_custom_call.1} parent=1 // pred_region
      _
    $region41: #{tpu_custom_call.1} parent=1 // pred_fallthru
      _
    // Predicated region
    $region42: #{tpu_custom_call.1} parent=1 // pred_check
      _
    $region43: #{tpu_custom_call.1} parent=1 // pred_check_branch
      %62 = sbr.rel (0) target = $region45
    $region44: #{tpu_custom_call.1} parent=1 // pred_region
      %63 = dma.done [#allocation3], 256
    $region45: #{tpu_custom_call.1} parent=1 // pred_fallthru
      _
    // Predicated region
    $region46: #{tpu_custom_call.1} parent=1 // pred_check
      _
    $region47: #{tpu_custom_call.1} parent=1 // pred_check_branch
      %65 = sbr.rel (0) target = $region49
    $region48: #{tpu_custom_call.1} parent=1 // pred_region
      %66 = dma.done [#allocation6], 256
    $region49: #{tpu_custom_call.1} parent=1 // pred_fallthru
      _
    %v68 = vld [vmem:[%s0] sm:$0xff]
    %v69 = vld [vmem:[%s0 + $0x8] sm:$0xff]
    %v70 = vpack.c.bf16 %v69, %v68
    %v71 = vld [vmem:[%s2] sm:$0xf]
    %v72 = vld [vmem:[%s2 + $0x4] sm:$0xf]
    %v73 = vld [vmem:[%s2 + $0x8] sm:$0xf]
    %v74 = vld [vmem:[%s2 + $0xc] sm:$0xf]
    %v75 = vld [vmem:[%s3] sm:$0x1]
    %v77 = vlaneseq
    %v78 = vshrl.u32 %v77, 7
    %v79 = vsub.s32 0, %v78
    %v80 = vrot.slane %v75, %v79
    %v86 = vunpack.c.l.b16 %v71
    %v87 = vunpack.c.l.b16 %v72
    %v88 = vunpack.c.l.b16 %v73
    %v89 = vunpack.c.l.b16 %v74
    %v90 = vpack.c.b16 %v87, %v86
    %v91 = vpack.c.b16 %v89, %v88
    %vm94 = vcmask 261120
    %v96 = vsel %vm94, %v70, 0
    %98 = vmatprep.subr.bf16.mxu0 0
    %99 = vmatpush1.bf16.msra.mxu0 %v90
    %100 = vmatprep.subr.bf16.mxu0 0
    %101 = vmatpush1.bf16.msra.mxu0 %v91
    %102 = vmatprep.subr.bf16.mxu0 0
    %103 = vmatpush1.bf16.msra.mxu0 0
    %104 = vmatprep.subr.bf16.mxu0 0
    %105 = vmatpush1.bf16.msra.mxu0 0
    %106 = vmatprep.subr.bf16.mxu0 0
    %107 = vmatpush1.bf16.msra.mxu0 0
    %108 = vmatprep.subr.bf16.mxu0 0
    %109 = vmatpush1.bf16.msra.mxu0 0
    %110 = vmatprep.subr.bf16.mxu0 0
    %111 = vmatpush1.bf16.msra.mxu0 0
    %112 = vmatprep.subr.bf16.mxu0 0
    %113 = vmatpush1.bf16.msra.mxu0 0
    %114 = vmatprep.subr.bf16.mxu0 0
    %115 = vmatpush1.bf16.msra.mxu0 0
    %116 = vmatprep.subr.bf16.mxu0 0
    %117 = vmatpush1.bf16.msra.mxu0 0
    %118 = vmatprep.subr.bf16.mxu0 0
    %119 = vmatpush1.bf16.msra.mxu0 0
    %120 = vmatprep.subr.bf16.mxu0 0
    %121 = vmatpush1.bf16.msra.mxu0 0
    %122 = vmatprep.subr.bf16.mxu0 0
    %123 = vmatpush1.bf16.msra.mxu0 0
    %124 = vmatprep.subr.bf16.mxu0 0
    %125 = vmatpush1.bf16.msra.mxu0 0
    %126 = vmatprep.subr.bf16.mxu0 0
    %127 = vmatpush1.bf16.msra.mxu0 0
    %128 = vmatprep.subr.bf16.mxu0 0
    %129 = vmatpush1.bf16.msra.mxu0 0
    %130 = vmatprep.mubr.bf16.mxu0 0
    %131 = vmatmul.mubr.bf16.gmra.mrb[0].mxu0 %v96
    %v132 = vpop.f32.mrb[0].mxu0
    %v133 = vadd.f32 %v80, %v132
    %v134 = vpop.f32.mrb[0].mxu0
    %v135 = vpop.f32.mrb[0].mxu0
    %v136 = vadd.f32 %v80, %v135
    %v137 = vpop.f32.mrb[0].mxu0
    %138 = vdwg.mxu0
    %v139 = vld [vmem:[%s1] sm:$0xff]
    %v140 = vld [vmem:[%s1 + $0x8] sm:$0xff]
    %vm141 = vcmp.gt.f32.partialorder %v139, 0.5
    %vm142 = vcmp.gt.f32.partialorder %v140, 0.5
    %v143 = vpack.c.bf16 %v133, %v133
    %v144 = vpack.c.bf16 %v136, %v136
    %146 = vrot.lane.b32.xlu0 %v143, 96
    %v147 = vpop.permute.xlu0 %146
    %vm148 = vcmask 64512
    %v150 = vsel %vm148, %v143, 0
    %v153 = vsel %vm148, %v147, 0
    %155 = vmatprep.subr.bf16.mxu0 0
    %156 = vmatpush1.bf16.xpose.msra.mxu0 %v153
    %157 = vmatprep.subr.bf16.mxu0 0
    %158 = vmatpush1.bf16.xpose.msra.mxu0 0
    %159 = vmatprep.subr.bf16.mxu0 0
    %160 = vmatpush1.bf16.xpose.msra.mxu0 0
    %161 = vmatprep.subr.bf16.mxu0 0
    %162 = vmatpush1.bf16.xpose.msra.mxu0 0
    %163 = vmatprep.subr.bf16.mxu0 0
    %164 = vmatpush1.bf16.xpose.msra.mxu0 0
    %165 = vmatprep.subr.bf16.mxu0 0
    %166 = vmatpush1.bf16.xpose.msra.mxu0 0
    %167 = vmatprep.subr.bf16.mxu0 0
    %168 = vmatpush1.bf16.xpose.msra.mxu0 0
    %169 = vmatprep.subr.bf16.mxu0 0
    %170 = vmatpush1.bf16.xpose.msra.mxu0 0
    %171 = vmatprep.subr.bf16.mxu0 0
    %172 = vmatpush1.bf16.xpose.msra.mxu0 0
    %173 = vmatprep.subr.bf16.mxu0 0
    %174 = vmatpush1.bf16.xpose.msra.mxu0 0
    %175 = vmatprep.subr.bf16.mxu0 0
    %176 = vmatpush1.bf16.xpose.msra.mxu0 0
    %177 = vmatprep.subr.bf16.mxu0 0
    %178 = vmatpush1.bf16.xpose.msra.mxu0 0
    %179 = vmatprep.subr.bf16.mxu0 0
    %180 = vmatpush1.bf16.xpose.msra.mxu0 0
    %181 = vmatprep.subr.bf16.mxu0 0
    %182 = vmatpush1.bf16.xpose.msra.mxu0 0
    %183 = vmatprep.subr.bf16.mxu0 0
    %184 = vmatpush1.bf16.xpose.msra.mxu0 0
    %185 = vmatprep.subr.bf16.mxu0 0
    %186 = vmatpush1.bf16.xpose.msra.mxu0 0
    %187 = vmatprep.mubr.bf16.mxu0 0
    %188 = vmatmul.mubr.bf16.gmra.mrb[0].mxu0 %v150
    %v189 = vpop.f32.mrb[0].mxu0
    %v190 = vadd.f32 0.0, %v189
    %v191 = vpop.f32.mrb[0].mxu0
    %v192 = vpop.f32.mrb[0].mxu0
    %v193 = vpop.f32.mrb[0].mxu0
    %194 = vdwg.mxu0
    %196 = vrot.lane.b32.xlu0 %v144, 96
    %v197 = vpop.permute.xlu0 %196
    %v199 = vsel %vm148, %v144, 0
    %v202 = vsel %vm148, %v197, 0
    %204 = vmatprep.subr.bf16.mxu0 0
    %205 = vmatpush1.bf16.xpose.msra.mxu0 %v202
    %206 = vmatprep.subr.bf16.mxu0 0
    %207 = vmatpush1.bf16.xpose.msra.mxu0 0
    %208 = vmatprep.subr.bf16.mxu0 0
    %209 = vmatpush1.bf16.xpose.msra.mxu0 0
    %210 = vmatprep.subr.bf16.mxu0 0
    %211 = vmatpush1.bf16.xpose.msra.mxu0 0
    %212 = vmatprep.subr.bf16.mxu0 0
    %213 = vmatpush1.bf16.xpose.msra.mxu0 0
    %214 = vmatprep.subr.bf16.mxu0 0
    %215 = vmatpush1.bf16.xpose.msra.mxu0 0
    %216 = vmatprep.subr.bf16.mxu0 0
    %217 = vmatpush1.bf16.xpose.msra.mxu0 0
    %218 = vmatprep.subr.bf16.mxu0 0
    %219 = vmatpush1.bf16.xpose.msra.mxu0 0
    %220 = vmatprep.subr.bf16.mxu0 0
    %221 = vmatpush1.bf16.xpose.msra.mxu0 0
    %222 = vmatprep.subr.bf16.mxu0 0
    %223 = vmatpush1.bf16.xpose.msra.mxu0 0
    %224 = vmatprep.subr.bf16.mxu0 0
    %225 = vmatpush1.bf16.xpose.msra.mxu0 0
    %226 = vmatprep.subr.bf16.mxu0 0
    %227 = vmatpush1.bf16.xpose.msra.mxu0 0
    %228 = vmatprep.subr.bf16.mxu0 0
    %229 = vmatpush1.bf16.xpose.msra.mxu0 0
    %230 = vmatprep.subr.bf16.mxu0 0
    %231 = vmatpush1.bf16.xpose.msra.mxu0 0
    %232 = vmatprep.subr.bf16.mxu0 0
    %233 = vmatpush1.bf16.xpose.msra.mxu0 0
    %234 = vmatprep.subr.bf16.mxu0 0
    %235 = vmatpush1.bf16.xpose.msra.mxu0 0
    %236 = vmatprep.mubr.bf16.mxu0 0
    %237 = vmatmul.mubr.bf16.gmra.mrb[0].mxu0 %v199
    %v238 = vpop.f32.mrb[0].mxu0
    %v239 = vadd.f32 0.0, %v238
    %v240 = vpop.f32.mrb[0].mxu0
    %v241 = vpop.f32.mrb[0].mxu0
    %v242 = vpop.f32.mrb[0].mxu0
    %243 = vdwg.mxu0
    %v244 = vmul.f32 %v190, 0.35355338
    %v245 = vmul.f32 %v239, 0.35355338
    %v246 = vsel %vm141, -1e+09, %v244
    %v247 = vsel %vm142, -1e+09, %v245
    %v248 = vsel %vm148, %v246, -inf
    %249 = vmax.xlane.f32.xlu0 %v248
    %v250 = vpop.xlane.xlu0 %249
    %v251 = vsel %vm148, %v247, -inf
    %252 = vmax.xlane.f32.xlu0 %v251
    %v253 = vpop.xlane.xlu0 %252
    %v254 = vsub.f32 %v246, %v250
    %v255 = vsub.f32 %v247, %v253
    %v256 = vmul.f32 %v254, 1.442695
    %v257 = vpow.pop %v256
    %v258 = vmul.f32 %v255, 1.442695
    %v259 = vpow.pop %v258
    %v260 = vsel %vm148, %v257, 0.0
    %261 = vadd.xlane.f32.xlu0 %v260
    %v262 = vpop.xlane.xlu0 %261
    %v263 = vsel %vm148, %v259, 0.0
    %264 = vadd.xlane.f32.xlu0 %v263
    %v265 = vpop.xlane.xlu0 %264
    %v266 = vrcp.pop %v262
    %v267 = vrcp.pop %v265
    %v268 = vmul.f32 %v257, %v266
    %v269 = vmul.f32 %v259, %v267
    %270 = vst.msk [vmem:[#allocation8] sm:$0xff] %vm148, %v268
    %271 = vst.msk [vmem:[#allocation8 + $0x20] sm:$0xff] %vm148, %v269
    %v272 = vpack.c.bf16 %v268, %v268
    %v273 = vpack.c.bf16 %v269, %v269
    %274 = vrot.lane.b32.xlu0 %v143, 64
    %v275 = vpop.permute.xlu0 %274
    %v277 = vsel %vm148, %v272, 0
    %vm279 = vcmask 1043456
    %v281 = vsel %vm279, %v275, 0
    %283 = vmatprep.subr.bf16.mxu0 0
    %284 = vmatpush1.bf16.msra.mxu0 %v281
    %285 = vmatprep.subr.bf16.mxu0 0
    %286 = vmatpush1.bf16.msra.mxu0 0
    %287 = vmatprep.subr.bf16.mxu0 0
    %288 = vmatpush1.bf16.msra.mxu0 0
    %289 = vmatprep.subr.bf16.mxu0 0
    %290 = vmatpush1.bf16.msra.mxu0 0
    %291 = vmatprep.subr.bf16.mxu0 0
    %292 = vmatpush1.bf16.msra.mxu0 0
    %293 = vmatprep.subr.bf16.mxu0 0
    %294 = vmatpush1.bf16.msra.mxu0 0
    %295 = vmatprep.subr.bf16.mxu0 0
    %296 = vmatpush1.bf16.msra.mxu0 0
    %297 = vmatprep.subr.bf16.mxu0 0
    %298 = vmatpush1.bf16.msra.mxu0 0
    %299 = vmatprep.subr.bf16.mxu0 0
    %300 = vmatpush1.bf16.msra.mxu0 0
    %301 = vmatprep.subr.bf16.mxu0 0
    %302 = vmatpush1.bf16.msra.mxu0 0
    %303 = vmatprep.subr.bf16.mxu0 0
    %304 = vmatpush1.bf16.msra.mxu0 0
    %305 = vmatprep.subr.bf16.mxu0 0
    %306 = vmatpush1.bf16.msra.mxu0 0
    %307 = vmatprep.subr.bf16.mxu0 0
    %308 = vmatpush1.bf16.msra.mxu0 0
    %309 = vmatprep.subr.bf16.mxu0 0
    %310 = vmatpush1.bf16.msra.mxu0 0
    %311 = vmatprep.subr.bf16.mxu0 0
    %312 = vmatpush1.bf16.msra.mxu0 0
    %313 = vmatprep.subr.bf16.mxu0 0
    %314 = vmatpush1.bf16.msra.mxu0 0
    %315 = vmatprep.mubr.bf16.mxu0 0
    %316 = vmatmul.mubr.bf16.gmra.mrb[0].mxu0 %v277
    %v317 = vpop.f32.mrb[0].mxu0
    %v318 = vadd.f32 0.0, %v317
    %v319 = vpop.f32.mrb[0].mxu0
    %v320 = vpop.f32.mrb[0].mxu0
    %v321 = vpop.f32.mrb[0].mxu0
    %322 = vdwg.mxu0
    %323 = vrot.lane.b32.xlu0 %v144, 64
    %v324 = vpop.permute.xlu0 %323
    %v326 = vsel %vm148, %v273, 0
    %v329 = vsel %vm279, %v324, 0
    %331 = vmatprep.subr.bf16.mxu0 0
    %332 = vmatpush1.bf16.msra.mxu0 %v329
    %333 = vmatprep.subr.bf16.mxu0 0
    %334 = vmatpush1.bf16.msra.mxu0 0
    %335 = vmatprep.subr.bf16.mxu0 0
    %336 = vmatpush1.bf16.msra.mxu0 0
    %337 = vmatprep.subr.bf16.mxu0 0
    %338 = vmatpush1.bf16.msra.mxu0 0
    %339 = vmatprep.subr.bf16.mxu0 0
    %340 = vmatpush1.bf16.msra.mxu0 0
    %341 = vmatprep.subr.bf16.mxu0 0
    %342 = vmatpush1.bf16.msra.mxu0 0
    %343 = vmatprep.subr.bf16.mxu0 0
    %344 = vmatpush1.bf16.msra.mxu0 0
    %345 = vmatprep.subr.bf16.mxu0 0
    %346 = vmatpush1.bf16.msra.mxu0 0
    %347 = vmatprep.subr.bf16.mxu0 0
    %348 = vmatpush1.bf16.msra.mxu0 0
    %349 = vmatprep.subr.bf16.mxu0 0
    %350 = vmatpush1.bf16.msra.mxu0 0
    %351 = vmatprep.subr.bf16.mxu0 0
    %352 = vmatpush1.bf16.msra.mxu0 0
    %353 = vmatprep.subr.bf16.mxu0 0
    %354 = vmatpush1.bf16.msra.mxu0 0
    %355 = vmatprep.subr.bf16.mxu0 0
    %356 = vmatpush1.bf16.msra.mxu0 0
    %357 = vmatprep.subr.bf16.mxu0 0
    %358 = vmatpush1.bf16.msra.mxu0 0
    %359 = vmatprep.subr.bf16.mxu0 0
    %360 = vmatpush1.bf16.msra.mxu0 0
    %361 = vmatprep.subr.bf16.mxu0 0
    %362 = vmatpush1.bf16.msra.mxu0 0
    %363 = vmatprep.mubr.bf16.mxu0 0
    %364 = vmatmul.mubr.bf16.gmra.mrb[0].mxu0 %v326
    %v365 = vpop.f32.mrb[0].mxu0
    %v366 = vadd.f32 0.0, %v365
    %v367 = vpop.f32.mrb[0].mxu0
    %v368 = vpop.f32.mrb[0].mxu0
    %v369 = vpop.f32.mrb[0].mxu0
    %370 = vdwg.mxu0
    %371 = vrot.lane.b32.xlu0 %v143, 120
    %v372 = vpop.permute.xlu0 %371
    %373 = vrot.lane.b32.xlu0 %v143, 88
    %v374 = vpop.permute.xlu0 %373
    %v376 = vsel %vm148, %v372, 0
    %v379 = vsel %vm148, %v374, 0
    %381 = vmatprep.subr.bf16.mxu0 0
    %382 = vmatpush1.bf16.xpose.msra.mxu0 %v379
    %383 = vmatprep.subr.bf16.mxu0 0
    %384 = vmatpush1.bf16.xpose.msra.mxu0 0
    %385 = vmatprep.subr.bf16.mxu0 0
    %386 = vmatpush1.bf16.xpose.msra.mxu0 0
    %387 = vmatprep.subr.bf16.mxu0 0
    %388 = vmatpush1.bf16.xpose.msra.mxu0 0
    %389 = vmatprep.subr.bf16.mxu0 0
    %390 = vmatpush1.bf16.xpose.msra.mxu0 0
    %391 = vmatprep.subr.bf16.mxu0 0
    %392 = vmatpush1.bf16.xpose.msra.mxu0 0
    %393 = vmatprep.subr.bf16.mxu0 0
    %394 = vmatpush1.bf16.xpose.msra.mxu0 0
    %395 = vmatprep.subr.bf16.mxu0 0
    %396 = vmatpush1.bf16.xpose.msra.mxu0 0
    %397 = vmatprep.subr.bf16.mxu0 0
    %398 = vmatpush1.bf16.xpose.msra.mxu0 0
    %399 = vmatprep.subr.bf16.mxu0 0
    %400 = vmatpush1.bf16.xpose.msra.mxu0 0
    %401 = vmatprep.subr.bf16.mxu0 0
    %402 = vmatpush1.bf16.xpose.msra.mxu0 0
    %403 = vmatprep.subr.bf16.mxu0 0
    %404 = vmatpush1.bf16.xpose.msra.mxu0 0
    %405 = vmatprep.subr.bf16.mxu0 0
    %406 = vmatpush1.bf16.xpose.msra.mxu0 0
    %407 = vmatprep.subr.bf16.mxu0 0
    %408 = vmatpush1.bf16.xpose.msra.mxu0 0
    %409 = vmatprep.subr.bf16.mxu0 0
    %410 = vmatpush1.bf16.xpose.msra.mxu0 0
    %411 = vmatprep.subr.bf16.mxu0 0
    %412 = vmatpush1.bf16.xpose.msra.mxu0 0
    %413 = vmatprep.mubr.bf16.mxu0 0
    %414 = vmatmul.mubr.bf16.gmra.mrb[0].mxu0 %v376
    %v415 = vpop.f32.mrb[0].mxu0
    %v416 = vadd.f32 0.0, %v415
    %v417 = vpop.f32.mrb[0].mxu0
    %v418 = vpop.f32.mrb[0].mxu0
    %v419 = vpop.f32.mrb[0].mxu0
    %420 = vdwg.mxu0
    %421 = vrot.lane.b32.xlu0 %v144, 120
    %v422 = vpop.permute.xlu0 %421
    %423 = vrot.lane.b32.xlu0 %v144, 88
    %v424 = vpop.permute.xlu0 %423
    %v426 = vsel %vm148, %v422, 0
    %v429 = vsel %vm148, %v424, 0
    %431 = vmatprep.subr.bf16.mxu0 0
    %432 = vmatpush1.bf16.xpose.msra.mxu0 %v429
    %433 = vmatprep.subr.bf16.mxu0 0
    %434 = vmatpush1.bf16.xpose.msra.mxu0 0
    %435 = vmatprep.subr.bf16.mxu0 0
    %436 = vmatpush1.bf16.xpose.msra.mxu0 0
    %437 = vmatprep.subr.bf16.mxu0 0
    %438 = vmatpush1.bf16.xpose.msra.mxu0 0
    %439 = vmatprep.subr.bf16.mxu0 0
    %440 = vmatpush1.bf16.xpose.msra.mxu0 0
    %441 = vmatprep.subr.bf16.mxu0 0
    %442 = vmatpush1.bf16.xpose.msra.mxu0 0
    %443 = vmatprep.subr.bf16.mxu0 0
    %444 = vmatpush1.bf16.xpose.msra.mxu0 0
    %445 = vmatprep.subr.bf16.mxu0 0
    %446 = vmatpush1.bf16.xpose.msra.mxu0 0
    %447 = vmatprep.subr.bf16.mxu0 0
    %448 = vmatpush1.bf16.xpose.msra.mxu0 0
    %449 = vmatprep.subr.bf16.mxu0 0
    %450 = vmatpush1.bf16.xpose.msra.mxu0 0
    %451 = vmatprep.subr.bf16.mxu0 0
    %452 = vmatpush1.bf16.xpose.msra.mxu0 0
    %453 = vmatprep.subr.bf16.mxu0 0
    %454 = vmatpush1.bf16.xpose.msra.mxu0 0
    %455 = vmatprep.subr.bf16.mxu0 0
    %456 = vmatpush1.bf16.xpose.msra.mxu0 0
    %457 = vmatprep.subr.bf16.mxu0 0
    %458 = vmatpush1.bf16.xpose.msra.mxu0 0
    %459 = vmatprep.subr.bf16.mxu0 0
    %460 = vmatpush1.bf16.xpose.msra.mxu0 0
    %461 = vmatprep.subr.bf16.mxu0 0
    %462 = vmatpush1.bf16.xpose.msra.mxu0 0
    %463 = vmatprep.mubr.bf16.mxu0 0
    %464 = vmatmul.mubr.bf16.gmra.mrb[0].mxu0 %v426
    %v465 = vpop.f32.mrb[0].mxu0
    %v466 = vadd.f32 0.0, %v465
    %v467 = vpop.f32.mrb[0].mxu0
    %v468 = vpop.f32.mrb[0].mxu0
    %v469 = vpop.f32.mrb[0].mxu0
    %470 = vdwg.mxu0
    %v471 = vmul.f32 %v416, 0.35355338
    %v472 = vmul.f32 %v466, 0.35355338
    %v473 = vsel %vm141, -1e+09, %v471
    %v474 = vsel %vm142, -1e+09, %v472
    %v475 = vsel %vm148, %v473, -inf
    %476 = vmax.xlane.f32.xlu0 %v475
    %v477 = vpop.xlane.xlu0 %476
    %v478 = vsel %vm148, %v474, -inf
    %479 = vmax.xlane.f32.xlu0 %v478
    %v480 = vpop.xlane.xlu0 %479
    %v481 = vsub.f32 %v473, %v477
    %v482 = vsub.f32 %v474, %v480
    %v483 = vmul.f32 %v481, 1.442695
    %v484 = vpow.pop %v483
    %v485 = vmul.f32 %v482, 1.442695
    %v486 = vpow.pop %v485
    %v487 = vsel %vm148, %v484, 0.0
    %488 = vadd.xlane.f32.xlu0 %v487
    %v489 = vpop.xlane.xlu0 %488
    %v490 = vsel %vm148, %v486, 0.0
    %491 = vadd.xlane.f32.xlu0 %v490
    %v492 = vpop.xlane.xlu0 %491
    %v493 = vrcp.pop %v489
    %v494 = vrcp.pop %v492
    %v495 = vmul.f32 %v484, %v493
    %v496 = vmul.f32 %v486, %v494
    %s497 = scalar_lea.vmem [#allocation8], 8
    %498 = vst.msk [vmem:[%s497] sm:$0xff] %vm148, %v495
    %499 = vst.msk [vmem:[%s497 + $0x20] sm:$0xff] %vm148, %v496
    %v500 = vpack.c.bf16 %v495, %v495
    %v501 = vpack.c.bf16 %v496, %v496
    %502 = vrot.lane.b32.xlu0 %v143, 56
    %v503 = vpop.permute.xlu0 %502
    %v505 = vsel %vm148, %v500, 0
    %v508 = vsel %vm279, %v503, 0
    %510 = vmatprep.subr.bf16.mxu0 0
    %511 = vmatpush1.bf16.msra.mxu0 %v508
    %512 = vmatprep.subr.bf16.mxu0 0
    %513 = vmatpush1.bf16.msra.mxu0 0
    %514 = vmatprep.subr.bf16.mxu0 0
    %515 = vmatpush1.bf16.msra.mxu0 0
    %516 = vmatprep.subr.bf16.mxu0 0
    %517 = vmatpush1.bf16.msra.mxu0 0
    %518 = vmatprep.subr.bf16.mxu0 0
    %519 = vmatpush1.bf16.msra.mxu0 0
    %520 = vmatprep.subr.bf16.mxu0 0
    %521 = vmatpush1.bf16.msra.mxu0 0
    %522 = vmatprep.subr.bf16.mxu0 0
    %523 = vmatpush1.bf16.msra.mxu0 0
    %524 = vmatprep.subr.bf16.mxu0 0
    %525 = vmatpush1.bf16.msra.mxu0 0
    %526 = vmatprep.subr.bf16.mxu0 0
    %527 = vmatpush1.bf16.msra.mxu0 0
    %528 = vmatprep.subr.bf16.mxu0 0
    %529 = vmatpush1.bf16.msra.mxu0 0
    %530 = vmatprep.subr.bf16.mxu0 0
    %531 = vmatpush1.bf16.msra.mxu0 0
    %532 = vmatprep.subr.bf16.mxu0 0
    %533 = vmatpush1.bf16.msra.mxu0 0
    %534 = vmatprep.subr.bf16.mxu0 0
    %535 = vmatpush1.bf16.msra.mxu0 0
    %536 = vmatprep.subr.bf16.mxu0 0
    %537 = vmatpush1.bf16.msra.mxu0 0
    %538 = vmatprep.subr.bf16.mxu0 0
    %539 = vmatpush1.bf16.msra.mxu0 0
    %540 = vmatprep.subr.bf16.mxu0 0
    %541 = vmatpush1.bf16.msra.mxu0 0
    %542 = vmatprep.mubr.bf16.mxu0 0
    %543 = vmatmul.mubr.bf16.gmra.mrb[0].mxu0 %v505
    %v544 = vpop.f32.mrb[0].mxu0
    %v545 = vadd.f32 0.0, %v544
    %v546 = vpop.f32.mrb[0].mxu0
    %v547 = vpop.f32.mrb[0].mxu0
    %v548 = vpop.f32.mrb[0].mxu0
    %549 = vdwg.mxu0
    %550 = vrot.lane.b32.xlu0 %v144, 56
    %v551 = vpop.permute.xlu0 %550
    %v553 = vsel %vm148, %v501, 0
    %v556 = vsel %vm279, %v551, 0
    %558 = vmatprep.subr.bf16.mxu0 0
    %559 = vmatpush1.bf16.msra.mxu0 %v556
    %560 = vmatprep.subr.bf16.mxu0 0
    %561 = vmatpush1.bf16.msra.mxu0 0
    %562 = vmatprep.subr.bf16.mxu0 0
    %563 = vmatpush1.bf16.msra.mxu0 0
    %564 = vmatprep.subr.bf16.mxu0 0
    %565 = vmatpush1.bf16.msra.mxu0 0
    %566 = vmatprep.subr.bf16.mxu0 0
    %567 = vmatpush1.bf16.msra.mxu0 0
    %568 = vmatprep.subr.bf16.mxu0 0
    %569 = vmatpush1.bf16.msra.mxu0 0
    %570 = vmatprep.subr.bf16.mxu0 0
    %571 = vmatpush1.bf16.msra.mxu0 0
    %572 = vmatprep.subr.bf16.mxu0 0
    %573 = vmatpush1.bf16.msra.mxu0 0
    %574 = vmatprep.subr.bf16.mxu0 0
    %575 = vmatpush1.bf16.msra.mxu0 0
    %576 = vmatprep.subr.bf16.mxu0 0
    %577 = vmatpush1.bf16.msra.mxu0 0
    %578 = vmatprep.subr.bf16.mxu0 0
    %579 = vmatpush1.bf16.msra.mxu0 0
    %580 = vmatprep.subr.bf16.mxu0 0
    %581 = vmatpush1.bf16.msra.mxu0 0
    %582 = vmatprep.subr.bf16.mxu0 0
    %583 = vmatpush1.bf16.msra.mxu0 0
    %584 = vmatprep.subr.bf16.mxu0 0
    %585 = vmatpush1.bf16.msra.mxu0 0
    %586 = vmatprep.subr.bf16.mxu0 0
    %587 = vmatpush1.bf16.msra.mxu0 0
    %588 = vmatprep.subr.bf16.mxu0 0
    %589 = vmatpush1.bf16.msra.mxu0 0
    %590 = vmatprep.mubr.bf16.mxu0 0
    %591 = vmatmul.mubr.bf16.gmra.mrb[0].mxu0 %v553
    %v592 = vpop.f32.mrb[0].mxu0
    %v593 = vadd.f32 0.0, %v592
    %v594 = vpop.f32.mrb[0].mxu0
    %v595 = vpop.f32.mrb[0].mxu0
    %v596 = vpop.f32.mrb[0].mxu0
    %597 = vdwg.mxu0
    %598 = vrot.lane.b32.xlu0 %v143, 112
    %v599 = vpop.permute.xlu0 %598
    %600 = vrot.lane.b32.xlu0 %v143, 80
    %v601 = vpop.permute.xlu0 %600
    %v603 = vsel %vm148, %v599, 0
    %v606 = vsel %vm148, %v601, 0
    %608 = vmatprep.subr.bf16.mxu0 0
    %609 = vmatpush1.bf16.xpose.msra.mxu0 %v606
    %610 = vmatprep.subr.bf16.mxu0 0
    %611 = vmatpush1.bf16.xpose.msra.mxu0 0
    %612 = vmatprep.subr.bf16.mxu0 0
    %613 = vmatpush1.bf16.xpose.msra.mxu0 0
    %614 = vmatprep.subr.bf16.mxu0 0
    %615 = vmatpush1.bf16.xpose.msra.mxu0 0
    %616 = vmatprep.subr.bf16.mxu0 0
    %617 = vmatpush1.bf16.xpose.msra.mxu0 0
    %618 = vmatprep.subr.bf16.mxu0 0
    %619 = vmatpush1.bf16.xpose.msra.mxu0 0
    %620 = vmatprep.subr.bf16.mxu0 0
    %621 = vmatpush1.bf16.xpose.msra.mxu0 0
    %622 = vmatprep.subr.bf16.mxu0 0
    %623 = vmatpush1.bf16.xpose.msra.mxu0 0
    %624 = vmatprep.subr.bf16.mxu0 0
    %625 = vmatpush1.bf16.xpose.msra.mxu0 0
    %626 = vmatprep.subr.bf16.mxu0 0
    %627 = vmatpush1.bf16.xpose.msra.mxu0 0
    %628 = vmatprep.subr.bf16.mxu0 0
    %629 = vmatpush1.bf16.xpose.msra.mxu0 0
    %630 = vmatprep.subr.bf16.mxu0 0
    %631 = vmatpush1.bf16.xpose.msra.mxu0 0
    %632 = vmatprep.subr.bf16.mxu0 0
    %633 = vmatpush1.bf16.xpose.msra.mxu0 0
    %634 = vmatprep.subr.bf16.mxu0 0
    %635 = vmatpush1.bf16.xpose.msra.mxu0 0
    %636 = vmatprep.subr.bf16.mxu0 0
    %637 = vmatpush1.bf16.xpose.msra.mxu0 0
    %638 = vmatprep.subr.bf16.mxu0 0
    %639 = vmatpush1.bf16.xpose.msra.mxu0 0
    %640 = vmatprep.mubr.bf16.mxu0 0
    %641 = vmatmul.mubr.bf16.gmra.mrb[0].mxu0 %v603
    %v642 = vpop.f32.mrb[0].mxu0
    %v643 = vadd.f32 0.0, %v642
    %v644 = vpop.f32.mrb[0].mxu0
    %v645 = vpop.f32.mrb[0].mxu0
    %v646 = vpop.f32.mrb[0].mxu0
    %647 = vdwg.mxu0
    %648 = vrot.lane.b32.xlu0 %v144, 112
    %v649 = vpop.permute.xlu0 %648
    %650 = vrot.lane.b32.xlu0 %v144, 80
    %v651 = vpop.permute.xlu0 %650
    %v653 = vsel %vm148, %v649, 0
    %v656 = vsel %vm148, %v651, 0
    %658 = vmatprep.subr.bf16.mxu0 0
    %659 = vmatpush1.bf16.xpose.msra.mxu0 %v656
    %660 = vmatprep.subr.bf16.mxu0 0
    %661 = vmatpush1.bf16.xpose.msra.mxu0 0
    %662 = vmatprep.subr.bf16.mxu0 0
    %663 = vmatpush1.bf16.xpose.msra.mxu0 0
    %664 = vmatprep.subr.bf16.mxu0 0
    %665 = vmatpush1.bf16.xpose.msra.mxu0 0
    %666 = vmatprep.subr.bf16.mxu0 0
    %667 = vmatpush1.bf16.xpose.msra.mxu0 0
    %668 = vmatprep.subr.bf16.mxu0 0
    %669 = vmatpush1.bf16.xpose.msra.mxu0 0
    %670 = vmatprep.subr.bf16.mxu0 0
    %671 = vmatpush1.bf16.xpose.msra.mxu0 0
    %672 = vmatprep.subr.bf16.mxu0 0
    %673 = vmatpush1.bf16.xpose.msra.mxu0 0
    %674 = vmatprep.subr.bf16.mxu0 0
    %675 = vmatpush1.bf16.xpose.msra.mxu0 0
    %676 = vmatprep.subr.bf16.mxu0 0
    %677 = vmatpush1.bf16.xpose.msra.mxu0 0
    %678 = vmatprep.subr.bf16.mxu0 0
    %679 = vmatpush1.bf16.xpose.msra.mxu0 0
    %680 = vmatprep.subr.bf16.mxu0 0
    %681 = vmatpush1.bf16.xpose.msra.mxu0 0
    %682 = vmatprep.subr.bf16.mxu0 0
    %683 = vmatpush1.bf16.xpose.msra.mxu0 0
    %684 = vmatprep.subr.bf16.mxu0 0
    %685 = vmatpush1.bf16.xpose.msra.mxu0 0
    %686 = vmatprep.subr.bf16.mxu0 0
    %687 = vmatpush1.bf16.xpose.msra.mxu0 0
    %688 = vmatprep.subr.bf16.mxu0 0
    %689 = vmatpush1.bf16.xpose.msra.mxu0 0
    %690 = vmatprep.mubr.bf16.mxu0 0
    %691 = vmatmul.mubr.bf16.gmra.mrb[0].mxu0 %v653
    %v692 = vpop.f32.mrb[0].mxu0
    %v693 = vadd.f32 0.0, %v692
    %v694 = vpop.f32.mrb[0].mxu0
    %v695 = vpop.f32.mrb[0].mxu0
    %v696 = vpop.f32.mrb[0].mxu0
    %697 = vdwg.mxu0
    %v698 = vmul.f32 %v643, 0.35355338
    %v699 = vmul.f32 %v693, 0.35355338
    %v700 = vsel %vm141, -1e+09, %v698
    %v701 = vsel %vm142, -1e+09, %v699
    %v702 = vsel %vm148, %v700, -inf
    %703 = vmax.xlane.f32.xlu0 %v702
    %v704 = vpop.xlane.xlu0 %703
    %v705 = vsel %vm148, %v701, -inf
    %706 = vmax.xlane.f32.xlu0 %v705
    %v707 = vpop.xlane.xlu0 %706
    %v708 = vsub.f32 %v700, %v704
    %v709 = vsub.f32 %v701, %v707
    %v710 = vmul.f32 %v708, 1.442695
    %v711 = vpow.pop %v710
    %v712 = vmul.f32 %v709, 1.442695
    %v713 = vpow.pop %v712
    %v714 = vsel %vm148, %v711, 0.0
    %715 = vadd.xlane.f32.xlu0 %v714
    %v716 = vpop.xlane.xlu0 %715
    %v717 = vsel %vm148, %v713, 0.0
    %718 = vadd.xlane.f32.xlu0 %v717
    %v719 = vpop.xlane.xlu0 %718
    %v720 = vrcp.pop %v716
    %v721 = vrcp.pop %v719
    %v722 = vmul.f32 %v711, %v720
    %v723 = vmul.f32 %v713, %v721
    %s724 = scalar_lea.vmem [#allocation8], 16
    %725 = vst.msk [vmem:[%s724] sm:$0xff] %vm148, %v722
    %726 = vst.msk [vmem:[%s724 + $0x20] sm:$0xff] %vm148, %v723
    %v727 = vpack.c.bf16 %v722, %v722
    %v728 = vpack.c.bf16 %v723, %v723
    %729 = vrot.lane.b32.xlu0 %v143, 48
    %v730 = vpop.permute.xlu0 %729
    %v732 = vsel %vm148, %v727, 0
    %v735 = vsel %vm279, %v730, 0
    %737 = vmatprep.subr.bf16.mxu0 0
    %738 = vmatpush1.bf16.msra.mxu0 %v735
    %739 = vmatprep.subr.bf16.mxu0 0
    %740 = vmatpush1.bf16.msra.mxu0 0
    %741 = vmatprep.subr.bf16.mxu0 0
    %742 = vmatpush1.bf16.msra.mxu0 0
    %743 = vmatprep.subr.bf16.mxu0 0
    %744 = vmatpush1.bf16.msra.mxu0 0
    %745 = vmatprep.subr.bf16.mxu0 0
    %746 = vmatpush1.bf16.msra.mxu0 0
    %747 = vmatprep.subr.bf16.mxu0 0
    %748 = vmatpush1.bf16.msra.mxu0 0
    %749 = vmatprep.subr.bf16.mxu0 0
    %750 = vmatpush1.bf16.msra.mxu0 0
    %751 = vmatprep.subr.bf16.mxu0 0
    %752 = vmatpush1.bf16.msra.mxu0 0
    %753 = vmatprep.subr.bf16.mxu0 0
    %754 = vmatpush1.bf16.msra.mxu0 0
    %755 = vmatprep.subr.bf16.mxu0 0
    %756 = vmatpush1.bf16.msra.mxu0 0
    %757 = vmatprep.subr.bf16.mxu0 0
    %758 = vmatpush1.bf16.msra.mxu0 0
    %759 = vmatprep.subr.bf16.mxu0 0
    %760 = vmatpush1.bf16.msra.mxu0 0
    %761 = vmatprep.subr.bf16.mxu0 0
    %762 = vmatpush1.bf16.msra.mxu0 0
    %763 = vmatprep.subr.bf16.mxu0 0
    %764 = vmatpush1.bf16.msra.mxu0 0
    %765 = vmatprep.subr.bf16.mxu0 0
    %766 = vmatpush1.bf16.msra.mxu0 0
    %767 = vmatprep.subr.bf16.mxu0 0
    %768 = vmatpush1.bf16.msra.mxu0 0
    %769 = vmatprep.mubr.bf16.mxu0 0
    %770 = vmatmul.mubr.bf16.gmra.mrb[0].mxu0 %v732
    %v771 = vpop.f32.mrb[0].mxu0
    %v772 = vadd.f32 0.0, %v771
    %v773 = vpop.f32.mrb[0].mxu0
    %v774 = vpop.f32.mrb[0].mxu0
    %v775 = vpop.f32.mrb[0].mxu0
    %776 = vdwg.mxu0
    %777 = vrot.lane.b32.xlu0 %v144, 48
    %v778 = vpop.permute.xlu0 %777
    %v780 = vsel %vm148, %v728, 0
    %v783 = vsel %vm279, %v778, 0
    %785 = vmatprep.subr.bf16.mxu0 0
    %786 = vmatpush1.bf16.msra.mxu0 %v783
    %787 = vmatprep.subr.bf16.mxu0 0
    %788 = vmatpush1.bf16.msra.mxu0 0
    %789 = vmatprep.subr.bf16.mxu0 0
    %790 = vmatpush1.bf16.msra.mxu0 0
    %791 = vmatprep.subr.bf16.mxu0 0
    %792 = vmatpush1.bf16.msra.mxu0 0
    %793 = vmatprep.subr.bf16.mxu0 0
    %794 = vmatpush1.bf16.msra.mxu0 0
    %795 = vmatprep.subr.bf16.mxu0 0
    %796 = vmatpush1.bf16.msra.mxu0 0
    %797 = vmatprep.subr.bf16.mxu0 0
    %798 = vmatpush1.bf16.msra.mxu0 0
    %799 = vmatprep.subr.bf16.mxu0 0
    %800 = vmatpush1.bf16.msra.mxu0 0
    %801 = vmatprep.subr.bf16.mxu0 0
    %802 = vmatpush1.bf16.msra.mxu0 0
    %803 = vmatprep.subr.bf16.mxu0 0
    %804 = vmatpush1.bf16.msra.mxu0 0
    %805 = vmatprep.subr.bf16.mxu0 0
    %806 = vmatpush1.bf16.msra.mxu0 0
    %807 = vmatprep.subr.bf16.mxu0 0
    %808 = vmatpush1.bf16.msra.mxu0 0
    %809 = vmatprep.subr.bf16.mxu0 0
    %810 = vmatpush1.bf16.msra.mxu0 0
    %811 = vmatprep.subr.bf16.mxu0 0
    %812 = vmatpush1.bf16.msra.mxu0 0
    %813 = vmatprep.subr.bf16.mxu0 0
    %814 = vmatpush1.bf16.msra.mxu0 0
    %815 = vmatprep.subr.bf16.mxu0 0
    %816 = vmatpush1.bf16.msra.mxu0 0
    %817 = vmatprep.mubr.bf16.mxu0 0
    %818 = vmatmul.mubr.bf16.gmra.mrb[0].mxu0 %v780
    %v819 = vpop.f32.mrb[0].mxu0
    %v820 = vadd.f32 0.0, %v819
    %v821 = vpop.f32.mrb[0].mxu0
    %v822 = vpop.f32.mrb[0].mxu0
    %v823 = vpop.f32.mrb[0].mxu0
    %824 = vdwg.mxu0
    %825 = vrot.lane.b32.xlu0 %v143, 104
    %v826 = vpop.permute.xlu0 %825
    %827 = vrot.lane.b32.xlu0 %v143, 72
    %v828 = vpop.permute.xlu0 %827
    %v830 = vsel %vm148, %v826, 0
    %v833 = vsel %vm148, %v828, 0
    %835 = vmatprep.subr.bf16.mxu0 0
    %836 = vmatpush1.bf16.xpose.msra.mxu0 %v833
    %837 = vmatprep.subr.bf16.mxu0 0
    %838 = vmatpush1.bf16.xpose.msra.mxu0 0
    %839 = vmatprep.subr.bf16.mxu0 0
    %840 = vmatpush1.bf16.xpose.msra.mxu0 0
    %841 = vmatprep.subr.bf16.mxu0 0
    %842 = vmatpush1.bf16.xpose.msra.mxu0 0
    %843 = vmatprep.subr.bf16.mxu0 0
    %844 = vmatpush1.bf16.xpose.msra.mxu0 0
    %845 = vmatprep.subr.bf16.mxu0 0
    %846 = vmatpush1.bf16.xpose.msra.mxu0 0
    %847 = vmatprep.subr.bf16.mxu0 0
    %848 = vmatpush1.bf16.xpose.msra.mxu0 0
    %849 = vmatprep.subr.bf16.mxu0 0
    %850 = vmatpush1.bf16.xpose.msra.mxu0 0
    %851 = vmatprep.subr.bf16.mxu0 0
    %852 = vmatpush1.bf16.xpose.msra.mxu0 0
    %853 = vmatprep.subr.bf16.mxu0 0
    %854 = vmatpush1.bf16.xpose.msra.mxu0 0
    %855 = vmatprep.subr.bf16.mxu0 0
    %856 = vmatpush1.bf16.xpose.msra.mxu0 0
    %857 = vmatprep.subr.bf16.mxu0 0
    %858 = vmatpush1.bf16.xpose.msra.mxu0 0
    %859 = vmatprep.subr.bf16.mxu0 0
    %860 = vmatpush1.bf16.xpose.msra.mxu0 0
    %861 = vmatprep.subr.bf16.mxu0 0
    %862 = vmatpush1.bf16.xpose.msra.mxu0 0
    %863 = vmatprep.subr.bf16.mxu0 0
    %864 = vmatpush1.bf16.xpose.msra.mxu0 0
    %865 = vmatprep.subr.bf16.mxu0 0
    %866 = vmatpush1.bf16.xpose.msra.mxu0 0
    %867 = vmatprep.mubr.bf16.mxu0 0
    %868 = vmatmul.mubr.bf16.gmra.mrb[0].mxu0 %v830
    %v869 = vpop.f32.mrb[0].mxu0
    %v870 = vadd.f32 0.0, %v869
    %v871 = vpop.f32.mrb[0].mxu0
    %v872 = vpop.f32.mrb[0].mxu0
    %v873 = vpop.f32.mrb[0].mxu0
    %874 = vdwg.mxu0
    %875 = vrot.lane.b32.xlu0 %v144, 104
    %v876 = vpop.permute.xlu0 %875
    %877 = vrot.lane.b32.xlu0 %v144, 72
    %v878 = vpop.permute.xlu0 %877
    %v880 = vsel %vm148, %v876, 0
    %v883 = vsel %vm148, %v878, 0
    %885 = vmatprep.subr.bf16.mxu0 0
    %886 = vmatpush1.bf16.xpose.msra.mxu0 %v883
    %887 = vmatprep.subr.bf16.mxu0 0
    %888 = vmatpush1.bf16.xpose.msra.mxu0 0
    %889 = vmatprep.subr.bf16.mxu0 0
    %890 = vmatpush1.bf16.xpose.msra.mxu0 0
    %891 = vmatprep.subr.bf16.mxu0 0
    %892 = vmatpush1.bf16.xpose.msra.mxu0 0
    %893 = vmatprep.subr.bf16.mxu0 0
    %894 = vmatpush1.bf16.xpose.msra.mxu0 0
    %895 = vmatprep.subr.bf16.mxu0 0
    %896 = vmatpush1.bf16.xpose.msra.mxu0 0
    %897 = vmatprep.subr.bf16.mxu0 0
    %898 = vmatpush1.bf16.xpose.msra.mxu0 0
    %899 = vmatprep.subr.bf16.mxu0 0
    %900 = vmatpush1.bf16.xpose.msra.mxu0 0
    %901 = vmatprep.subr.bf16.mxu0 0
    %902 = vmatpush1.bf16.xpose.msra.mxu0 0
    %903 = vmatprep.subr.bf16.mxu0 0
    %904 = vmatpush1.bf16.xpose.msra.mxu0 0
    %905 = vmatprep.subr.bf16.mxu0 0
    %906 = vmatpush1.bf16.xpose.msra.mxu0 0
    %907 = vmatprep.subr.bf16.mxu0 0
    %908 = vmatpush1.bf16.xpose.msra.mxu0 0
    %909 = vmatprep.subr.bf16.mxu0 0
    %910 = vmatpush1.bf16.xpose.msra.mxu0 0
    %911 = vmatprep.subr.bf16.mxu0 0
    %912 = vmatpush1.bf16.xpose.msra.mxu0 0
    %913 = vmatprep.subr.bf16.mxu0 0
    %914 = vmatpush1.bf16.xpose.msra.mxu0 0
    %915 = vmatprep.subr.bf16.mxu0 0
    %916 = vmatpush1.bf16.xpose.msra.mxu0 0
    %917 = vmatprep.mubr.bf16.mxu0 0
    %918 = vmatmul.mubr.bf16.gmra.mrb[0].mxu0 %v880
    %v919 = vpop.f32.mrb[0].mxu0
    %v920 = vadd.f32 0.0, %v919
    %v921 = vpop.f32.mrb[0].mxu0
    %v922 = vpop.f32.mrb[0].mxu0
    %v923 = vpop.f32.mrb[0].mxu0
    %924 = vdwg.mxu0
    %v925 = vmul.f32 %v870, 0.35355338
    %v926 = vmul.f32 %v920, 0.35355338
    %v927 = vsel %vm141, -1e+09, %v925
    %v928 = vsel %vm142, -1e+09, %v926
    %v929 = vsel %vm148, %v927, -inf
    %930 = vmax.xlane.f32.xlu0 %v929
    %v931 = vpop.xlane.xlu0 %930
    %v932 = vsel %vm148, %v928, -inf
    %933 = vmax.xlane.f32.xlu0 %v932
    %v934 = vpop.xlane.xlu0 %933
    %v935 = vsub.f32 %v927, %v931
    %v936 = vsub.f32 %v928, %v934
    %v937 = vmul.f32 %v935, 1.442695
    %v938 = vpow.pop %v937
    %v939 = vmul.f32 %v936, 1.442695
    %v940 = vpow.pop %v939
    %v941 = vsel %vm148, %v938, 0.0
    %942 = vadd.xlane.f32.xlu0 %v941
    %v943 = vpop.xlane.xlu0 %942
    %v944 = vsel %vm148, %v940, 0.0
    %945 = vadd.xlane.f32.xlu0 %v944
    %v946 = vpop.xlane.xlu0 %945
    %v947 = vrcp.pop %v943
    %v948 = vrcp.pop %v946
    %v949 = vmul.f32 %v938, %v947
    %v950 = vmul.f32 %v940, %v948
    %s951 = scalar_lea.vmem [#allocation8], 24
    %952 = vst.msk [vmem:[%s951] sm:$0xff] %vm148, %v949
    %953 = vst.msk [vmem:[%s951 + $0x20] sm:$0xff] %vm148, %v950
    %v954 = vpack.c.bf16 %v949, %v949
    %v955 = vpack.c.bf16 %v950, %v950
    %956 = vrot.lane.b32.xlu0 %v143, 40
    %v957 = vpop.permute.xlu0 %956
    %v959 = vsel %vm148, %v954, 0
    %v962 = vsel %vm279, %v957, 0
    %964 = vmatprep.subr.bf16.mxu0 0
    %965 = vmatpush1.bf16.msra.mxu0 %v962
    %966 = vmatprep.subr.bf16.mxu0 0
    %967 = vmatpush1.bf16.msra.mxu0 0
    %968 = vmatprep.subr.bf16.mxu0 0
    %969 = vmatpush1.bf16.msra.mxu0 0
    %970 = vmatprep.subr.bf16.mxu0 0
    %971 = vmatpush1.bf16.msra.mxu0 0
    %972 = vmatprep.subr.bf16.mxu0 0
    %973 = vmatpush1.bf16.msra.mxu0 0
    %974 = vmatprep.subr.bf16.mxu0 0
    %975 = vmatpush1.bf16.msra.mxu0 0
    %976 = vmatprep.subr.bf16.mxu0 0
    %977 = vmatpush1.bf16.msra.mxu0 0
    %978 = vmatprep.subr.bf16.mxu0 0
    %979 = vmatpush1.bf16.msra.mxu0 0
    %980 = vmatprep.subr.bf16.mxu0 0
    %981 = vmatpush1.bf16.msra.mxu0 0
    %982 = vmatprep.subr.bf16.mxu0 0
    %983 = vmatpush1.bf16.msra.mxu0 0
    %984 = vmatprep.subr.bf16.mxu0 0
    %985 = vmatpush1.bf16.msra.mxu0 0
    %986 = vmatprep.subr.bf16.mxu0 0
    %987 = vmatpush1.bf16.msra.mxu0 0
    %988 = vmatprep.subr.bf16.mxu0 0
    %989 = vmatpush1.bf16.msra.mxu0 0
    %990 = vmatprep.subr.bf16.mxu0 0
    %991 = vmatpush1.bf16.msra.mxu0 0
    %992 = vmatprep.subr.bf16.mxu0 0
    %993 = vmatpush1.bf16.msra.mxu0 0
    %994 = vmatprep.subr.bf16.mxu0 0
    %995 = vmatpush1.bf16.msra.mxu0 0
    %996 = vmatprep.mubr.bf16.mxu0 0
    %997 = vmatmul.mubr.bf16.gmra.mrb[0].mxu0 %v959
    %v998 = vpop.f32.mrb[0].mxu0
    %v999 = vadd.f32 0.0, %v998
    %v1000 = vpop.f32.mrb[0].mxu0
    %v1001 = vpop.f32.mrb[0].mxu0
    %v1002 = vpop.f32.mrb[0].mxu0
    %1003 = vdwg.mxu0
    %1004 = vrot.lane.b32.xlu0 %v144, 40
    %v1005 = vpop.permute.xlu0 %1004
    %v1007 = vsel %vm148, %v955, 0
    %v1010 = vsel %vm279, %v1005, 0
    %1012 = vmatprep.subr.bf16.mxu0 0
    %1013 = vmatpush1.bf16.msra.mxu0 %v1010
    %1014 = vmatprep.subr.bf16.mxu0 0
    %1015 = vmatpush1.bf16.msra.mxu0 0
    %1016 = vmatprep.subr.bf16.mxu0 0
    %1017 = vmatpush1.bf16.msra.mxu0 0
    %1018 = vmatprep.subr.bf16.mxu0 0
    %1019 = vmatpush1.bf16.msra.mxu0 0
    %1020 = vmatprep.subr.bf16.mxu0 0
    %1021 = vmatpush1.bf16.msra.mxu0 0
    %1022 = vmatprep.subr.bf16.mxu0 0
    %1023 = vmatpush1.bf16.msra.mxu0 0
    %1024 = vmatprep.subr.bf16.mxu0 0
    %1025 = vmatpush1.bf16.msra.mxu0 0
    %1026 = vmatprep.subr.bf16.mxu0 0
    %1027 = vmatpush1.bf16.msra.mxu0 0
    %1028 = vmatprep.subr.bf16.mxu0 0
    %1029 = vmatpush1.bf16.msra.mxu0 0
    %1030 = vmatprep.subr.bf16.mxu0 0
    %1031 = vmatpush1.bf16.msra.mxu0 0
    %1032 = vmatprep.subr.bf16.mxu0 0
    %1033 = vmatpush1.bf16.msra.mxu0 0
    %1034 = vmatprep.subr.bf16.mxu0 0
    %1035 = vmatpush1.bf16.msra.mxu0 0
    %1036 = vmatprep.subr.bf16.mxu0 0
    %1037 = vmatpush1.bf16.msra.mxu0 0
    %1038 = vmatprep.subr.bf16.mxu0 0
    %1039 = vmatpush1.bf16.msra.mxu0 0
    %1040 = vmatprep.subr.bf16.mxu0 0
    %1041 = vmatpush1.bf16.msra.mxu0 0
    %1042 = vmatprep.subr.bf16.mxu0 0
    %1043 = vmatpush1.bf16.msra.mxu0 0
    %1044 = vmatprep.mubr.bf16.mxu0 0
    %1045 = vmatmul.mubr.bf16.gmra.mrb[0].mxu0 %v1007
    %v1046 = vpop.f32.mrb[0].mxu0
    %v1047 = vadd.f32 0.0, %v1046
    %v1048 = vpop.f32.mrb[0].mxu0
    %v1049 = vpop.f32.mrb[0].mxu0
    %v1050 = vpop.f32.mrb[0].mxu0
    %1051 = vdwg.mxu0
    %1054 = vrot.lane.b32.xlu0 %v545, 8
    %v1055 = vpop.permute.xlu0 %1054
    %1056 = vrot.lane.b32.xlu0 %v593, 8
    %v1057 = vpop.permute.xlu0 %1056
    %1062 = vrot.lane.b32.xlu0 %v772, 16
    %v1063 = vpop.permute.xlu0 %1062
    %1064 = vrot.lane.b32.xlu0 %v820, 16
    %v1065 = vpop.permute.xlu0 %1064
    %1070 = vrot.lane.b32.xlu0 %v999, 24
    %v1071 = vpop.permute.xlu0 %1070
    %1072 = vrot.lane.b32.xlu0 %v1047, 24
    %v1073 = vpop.permute.xlu0 %1072
    %v1076 = vsel %vm148, %v318, %v1055
    %v1077 = vsel %vm148, %v366, %v1057
    %vm1078 = vcmask 130048
    %v1079 = vsel %vm1078, %v1076, %v1063
    %v1080 = vsel %vm1078, %v1077, %v1065
    %vm1081 = vcmask 195584
    %v1082 = vsel %vm1081, %v1079, %v1071
    %v1083 = vsel %vm1081, %v1080, %v1073
    %v1084 = vpack.c.bf16 %v1083, %v1082
    %v1085 = vld [vmem:[#allocation2] sm:$0xf]
    %v1086 = vld [vmem:[#allocation2 + $0x4] sm:$0xf]
    %v1087 = vld [vmem:[#allocation2 + $0x8] sm:$0xf]
    %v1088 = vld [vmem:[#allocation2 + $0xc] sm:$0xf]
    %v1089 = vld [vmem:[%s5] sm:$0x1]
    %v1091 = vlaneseq
    %v1092 = vshrl.u32 %v1091, 7
    %v1093 = vsub.s32 0, %v1092
    %v1094 = vrot.slane %v1089, %v1093
    %v1100 = vunpack.c.l.b16 %v1085
    %v1101 = vunpack.c.l.b16 %v1086
    %v1102 = vunpack.c.l.b16 %v1087
    %v1103 = vunpack.c.l.b16 %v1088
    %v1104 = vpack.c.b16 %v1101, %v1100
    %v1105 = vpack.c.b16 %v1103, %v1102
    %v1109 = vsel %vm94, %v1084, 0
    %1111 = vmatprep.subr.bf16.mxu0 0
    %1112 = vmatpush1.bf16.msra.mxu0 %v1104
    %1113 = vmatprep.subr.bf16.mxu0 0
    %1114 = vmatpush1.bf16.msra.mxu0 %v1105
    %1115 = vmatprep.subr.bf16.mxu0 0
    %1116 = vmatpush1.bf16.msra.mxu0 0
    %1117 = vmatprep.subr.bf16.mxu0 0
    %1118 = vmatpush1.bf16.msra.mxu0 0
    %1119 = vmatprep.subr.bf16.mxu0 0
    %1120 = vmatpush1.bf16.msra.mxu0 0
    %1121 = vmatprep.subr.bf16.mxu0 0
    %1122 = vmatpush1.bf16.msra.mxu0 0
    %1123 = vmatprep.subr.bf16.mxu0 0
    %1124 = vmatpush1.bf16.msra.mxu0 0
    %1125 = vmatprep.subr.bf16.mxu0 0
    %1126 = vmatpush1.bf16.msra.mxu0 0
    %1127 = vmatprep.subr.bf16.mxu0 0
    %1128 = vmatpush1.bf16.msra.mxu0 0
    %1129 = vmatprep.subr.bf16.mxu0 0
    %1130 = vmatpush1.bf16.msra.mxu0 0
    %1131 = vmatprep.subr.bf16.mxu0 0
    %1132 = vmatpush1.bf16.msra.mxu0 0
    %1133 = vmatprep.subr.bf16.mxu0 0
    %1134 = vmatpush1.bf16.msra.mxu0 0
    %1135 = vmatprep.subr.bf16.mxu0 0
    %1136 = vmatpush1.bf16.msra.mxu0 0
    %1137 = vmatprep.subr.bf16.mxu0 0
    %1138 = vmatpush1.bf16.msra.mxu0 0
    %1139 = vmatprep.subr.bf16.mxu0 0
    %1140 = vmatpush1.bf16.msra.mxu0 0
    %1141 = vmatprep.subr.bf16.mxu0 0
    %1142 = vmatpush1.bf16.msra.mxu0 0
    %1143 = vmatprep.mubr.bf16.mxu0 0
    %1144 = vmatmul.mubr.bf16.gmra.mrb[0].mxu0 %v1109
    %v1145 = vpop.f32.mrb[0].mxu0
    %v1146 = vadd.f32 %v1094, %v1145
    %v1147 = vpop.f32.mrb[0].mxu0
    %v1148 = vpop.f32.mrb[0].mxu0
    %v1149 = vadd.f32 %v1094, %v1148
    %v1150 = vpop.f32.mrb[0].mxu0
    %1151 = vdwg.mxu0
    %v1152 = vadd.f32 %v1146, %v68
    %v1153 = vadd.f32 %v1149, %v69
    %v1154 = vsel %vm94, %v1152, 0.0
    %1155 = vadd.xlane.f32.xlu0 %v1154
    %v1156 = vpop.xlane.xlu0 %1155
    %v1157 = vsel %vm94, %v1153, 0.0
    %1158 = vadd.xlane.f32.xlu0 %v1157
    %v1159 = vpop.xlane.xlu0 %1158
    %v1160 = vrcp.pop 32.0
    %v1161 = vmul.f32 %v1156, %v1160
    %v1162 = vmul.f32 %v1159, %v1160
    %v1163 = vsub.f32 %v1152, %v1161
    %v1164 = vsub.f32 %v1153, %v1162
    %v1165 = vmul.f32 %v1163, %v1163
    %v1166 = vmul.f32 %v1164, %v1164
    %v1167 = vsel %vm94, %v1165, 0.0
    %1168 = vadd.xlane.f32.xlu0 %v1167
    %v1169 = vpop.xlane.xlu0 %1168
    %v1170 = vsel %vm94, %v1166, 0.0
    %1171 = vadd.xlane.f32.xlu0 %v1170
    %v1172 = vpop.xlane.xlu0 %1171
    %v1173 = vmul.f32 %v1169, %v1160
    %v1174 = vmul.f32 %v1172, %v1160
    %v1175 = vadd.f32 %v1173, 1e-05
    %v1176 = vadd.f32 %v1174, 1e-05
    %v1177 = vrsqrt.pop %v1175
    %v1178 = vrsqrt.pop %v1176
    %v1179 = vmul.f32 %v1163, %v1177
    %v1180 = vmul.f32 %v1164, %v1178
    %v1181 = vpack.c.bf16 %v1180, %v1179
    %v1182 = vld [vmem:[#allocation5] sm:$0xf]
    %v1183 = vld [vmem:[#allocation5 + $0x4] sm:$0xf]
    %v1184 = vld [vmem:[#allocation5 + $0x8] sm:$0xf]
    %v1185 = vld [vmem:[#allocation5 + $0xc] sm:$0xf]
    %v1186 = vld [vmem:[%s7] sm:$0x1]
    %v1188 = vlaneseq
    %v1189 = vshrl.u32 %v1188, 7
    %v1190 = vsub.s32 0, %v1189
    %v1191 = vrot.slane %v1186, %v1190
    %v1197 = vunpack.c.l.b16 %v1182
    %v1198 = vunpack.c.l.b16 %v1183
    %v1199 = vunpack.c.l.b16 %v1184
    %v1200 = vunpack.c.l.b16 %v1185
    %v1201 = vpack.c.b16 %v1198, %v1197
    %v1202 = vpack.c.b16 %v1200, %v1199
    %v1206 = vsel %vm94, %v1181, 0
    %1208 = vmatprep.subr.bf16.mxu0 0
    %1209 = vmatpush1.bf16.msra.mxu0 %v1201
    %1210 = vmatprep.subr.bf16.mxu0 0
    %1211 = vmatpush1.bf16.msra.mxu0 %v1202
    %1212 = vmatprep.subr.bf16.mxu0 0
    %1213 = vmatpush1.bf16.msra.mxu0 0
    %1214 = vmatprep.subr.bf16.mxu0 0
    %1215 = vmatpush1.bf16.msra.mxu0 0
    %1216 = vmatprep.subr.bf16.mxu0 0
    %1217 = vmatpush1.bf16.msra.mxu0 0
    %1218 = vmatprep.subr.bf16.mxu0 0
    %1219 = vmatpush1.bf16.msra.mxu0 0
    %1220 = vmatprep.subr.bf16.mxu0 0
    %1221 = vmatpush1.bf16.msra.mxu0 0
    %1222 = vmatprep.subr.bf16.mxu0 0
    %1223 = vmatpush1.bf16.msra.mxu0 0
    %1224 = vmatprep.subr.bf16.mxu0 0
    %1225 = vmatpush1.bf16.msra.mxu0 0
    %1226 = vmatprep.subr.bf16.mxu0 0
    %1227 = vmatpush1.bf16.msra.mxu0 0
    %1228 = vmatprep.subr.bf16.mxu0 0
    %1229 = vmatpush1.bf16.msra.mxu0 0
    %1230 = vmatprep.subr.bf16.mxu0 0
    %1231 = vmatpush1.bf16.msra.mxu0 0
    %1232 = vmatprep.subr.bf16.mxu0 0
    %1233 = vmatpush1.bf16.msra.mxu0 0
    %1234 = vmatprep.subr.bf16.mxu0 0
    %1235 = vmatpush1.bf16.msra.mxu0 0
    %1236 = vmatprep.subr.bf16.mxu0 0
    %1237 = vmatpush1.bf16.msra.mxu0 0
    %1238 = vmatprep.subr.bf16.mxu0 0
    %1239 = vmatpush1.bf16.msra.mxu0 0
    %1240 = vmatprep.mubr.bf16.mxu0 0
    %1241 = vmatmul.mubr.bf16.gmra.mrb[0].mxu0 %v1206
    %v1242 = vpop.f32.mrb[0].mxu0
    %v1243 = vadd.f32 %v1191, %v1242
    %v1244 = vpop.f32.mrb[0].mxu0
    %v1245 = vpop.f32.mrb[0].mxu0
    %v1246 = vadd.f32 %v1191, %v1245
    %v1247 = vpop.f32.mrb[0].mxu0
    %1248 = vdwg.mxu0
    %v1249 = vmax.f32 %v1243, 0.0
    %v1250 = vmax.f32 %v1246, 0.0
    %v1251 = vpack.c.bf16 %v1250, %v1249
    %v1252 = vld [vmem:[%s8] sm:$0xf]
    %v1253 = vld [vmem:[%s8 + $0x4] sm:$0xf]
    %v1254 = vld [vmem:[%s8 + $0x8] sm:$0xf]
    %v1255 = vld [vmem:[%s8 + $0xc] sm:$0xf]
    %v1256 = vld [vmem:[%s8 + $0x10] sm:$0xf]
    %v1257 = vld [vmem:[%s8 + $0x14] sm:$0xf]
    %v1258 = vld [vmem:[%s8 + $0x18] sm:$0xf]
    %v1259 = vld [vmem:[%s8 + $0x1c] sm:$0xf]
    %v1260 = vld [vmem:[%s9] sm:$0x1]
    %v1262 = vlaneseq
    %v1263 = vshrl.u32 %v1262, 7
    %v1264 = vsub.s32 0, %v1263
    %v1265 = vrot.slane %v1260, %v1264
    %v1275 = vunpack.c.l.b16 %v1252
    %v1276 = vunpack.c.l.b16 %v1253
    %v1277 = vunpack.c.l.b16 %v1254
    %v1278 = vunpack.c.l.b16 %v1255
    %v1279 = vunpack.c.l.b16 %v1256
    %v1280 = vunpack.c.l.b16 %v1257
    %v1281 = vunpack.c.l.b16 %v1258
    %v1282 = vunpack.c.l.b16 %v1259
    %v1283 = vpack.c.b16 %v1276, %v1275
    %v1284 = vpack.c.b16 %v1278, %v1277
    %v1285 = vpack.c.b16 %v1280, %v1279
    %v1286 = vpack.c.b16 %v1282, %v1281
    %vm1291 = vcmask 523264
    %v1293 = vsel %vm1291, %v1251, 0
    %1295 = vmatprep.subr.bf16.mxu0 0
    %1296 = vmatpush1.bf16.msra.mxu0 %v1283
    %1297 = vmatprep.subr.bf16.mxu0 0
    %1298 = vmatpush1.bf16.msra.mxu0 %v1284
    %1299 = vmatprep.subr.bf16.mxu0 0
    %1300 = vmatpush1.bf16.msra.mxu0 %v1285
    %1301 = vmatprep.subr.bf16.mxu0 0
    %1302 = vmatpush1.bf16.msra.mxu0 %v1286
    %1303 = vmatprep.subr.bf16.mxu0 0
    %1304 = vmatpush1.bf16.msra.mxu0 0
    %1305 = vmatprep.subr.bf16.mxu0 0
    %1306 = vmatpush1.bf16.msra.mxu0 0
    %1307 = vmatprep.subr.bf16.mxu0 0
    %1308 = vmatpush1.bf16.msra.mxu0 0
    %1309 = vmatprep.subr.bf16.mxu0 0
    %1310 = vmatpush1.bf16.msra.mxu0 0
    %1311 = vmatprep.subr.bf16.mxu0 0
    %1312 = vmatpush1.bf16.msra.mxu0 0
    %1313 = vmatprep.subr.bf16.mxu0 0
    %1314 = vmatpush1.bf16.msra.mxu0 0
    %1315 = vmatprep.subr.bf16.mxu0 0
    %1316 = vmatpush1.bf16.msra.mxu0 0
    %1317 = vmatprep.subr.bf16.mxu0 0
    %1318 = vmatpush1.bf16.msra.mxu0 0
    %1319 = vmatprep.subr.bf16.mxu0 0
    %1320 = vmatpush1.bf16.msra.mxu0 0
    %1321 = vmatprep.subr.bf16.mxu0 0
    %1322 = vmatpush1.bf16.msra.mxu0 0
    %1323 = vmatprep.subr.bf16.mxu0 0
    %1324 = vmatpush1.bf16.msra.mxu0 0
    %1325 = vmatprep.subr.bf16.mxu0 0
    %1326 = vmatpush1.bf16.msra.mxu0 0
    %1327 = vmatprep.mubr.bf16.mxu0 0
    %1328 = vmatmul.mubr.bf16.gmra.mrb[0].mxu0 %v1293
    %v1329 = vpop.f32.mrb[0].mxu0
    %v1330 = vadd.f32 %v1265, %v1329
    %v1331 = vpop.f32.mrb[0].mxu0
    %v1332 = vpop.f32.mrb[0].mxu0
    %v1333 = vadd.f32 %v1265, %v1332
    %v1334 = vpop.f32.mrb[0].mxu0
    %1335 = vdwg.mxu0
    %v1336 = vadd.f32 %v1330, %v1179
    %v1337 = vadd.f32 %v1333, %v1180
    %v1338 = vsel %vm94, %v1336, 0.0
    %1339 = vadd.xlane.f32.xlu0 %v1338
    %v1340 = vpop.xlane.xlu0 %1339
    %v1341 = vsel %vm94, %v1337, 0.0
    %1342 = vadd.xlane.f32.xlu0 %v1341
    %v1343 = vpop.xlane.xlu0 %1342
    %v1344 = vmul.f32 %v1340, %v1160
    %v1345 = vmul.f32 %v1343, %v1160
    %v1346 = vsub.f32 %v1336, %v1344
    %v1347 = vsub.f32 %v1337, %v1345
    %v1348 = vmul.f32 %v1346, %v1346
    %v1349 = vmul.f32 %v1347, %v1347
    %v1350 = vsel %vm94, %v1348, 0.0
    %1351 = vadd.xlane.f32.xlu0 %v1350
    %v1352 = vpop.xlane.xlu0 %1351
    %v1353 = vsel %vm94, %v1349, 0.0
    %1354 = vadd.xlane.f32.xlu0 %v1353
    %v1355 = vpop.xlane.xlu0 %1354
    %v1356 = vmul.f32 %v1352, %v1160
    %v1357 = vmul.f32 %v1355, %v1160
    %v1358 = vadd.f32 %v1356, 1e-05
    %v1359 = vadd.f32 %v1357, 1e-05
    %v1360 = vrsqrt.pop %v1358
    %v1361 = vrsqrt.pop %v1359
    %v1362 = vmul.f32 %v1346, %v1360
    %v1363 = vmul.f32 %v1347, %v1361
    %1364 = vst.msk [vmem:[#allocation7] sm:$0xff] %vm94, %v1362
    %1365 = vst.msk [vmem:[#allocation7 + $0x8] sm:$0xff] %vm94, %v1363
    // Predicated region
    $region50: #{tpu_custom_call.1} parent=1 // pred_check
      _
    $region51: #{tpu_custom_call.1} parent=1 // pred_check_branch
      %1367 = sbr.rel (0) target = $region53
    $region52: #{tpu_custom_call.1} parent=1 // pred_region
      %s1369 = ssub.s32 256, 256
      %1370 = vsyncadd [#allocation4], %s1369
      %s1371 = sshll.u32 [#allocation7], 4
      %s1372 = int_to_ptr.vmem [resolvable:$true] %s1371
      %1377 = dma.vmem_to_hbm [thread:$0]  %s1372, 256, %s10, [#allocation4], 128, 128, 8
    $region53: #{tpu_custom_call.1} parent=1 // pred_fallthru
      _
    // Predicated region
    $region54: #{tpu_custom_call.1} parent=1 // pred_check
      _
    $region55: #{tpu_custom_call.1} parent=1 // pred_check_branch
      %1379 = sbr.rel (0) target = $region57
    $region56: #{tpu_custom_call.1} parent=1 // pred_region
      %s1381 = ssub.s32 1024, 1024
      %1382 = vsyncadd [#allocation9], %s1381
      %s1383 = sshll.u32 [#allocation8], 4
      %s1384 = int_to_ptr.vmem [resolvable:$true] %s1383
      %1389 = dma.vmem_to_hbm [thread:$0]  %s1384, 1024, %s11, [#allocation9], 128, 128, 8
    $region57: #{tpu_custom_call.1} parent=1 // pred_fallthru
      _
    // Predicated region
    $region58: #{tpu_custom_call.1} parent=1 // pred_check
      _
    $region59: #{tpu_custom_call.1} parent=1 // pred_check_branch
      %1391 = sbr.rel (0) target = $region61
    $region60: #{tpu_custom_call.1} parent=1 // pred_region
      %1392 = dma.done [#allocation4], 256
    $region61: #{tpu_custom_call.1} parent=1 // pred_fallthru
      _
    // Predicated region
    $region62: #{tpu_custom_call.1} parent=1 // pred_check
      _
    $region63: #{tpu_custom_call.1} parent=1 // pred_check_branch
      %1394 = sbr.rel (0) target = $region65
    $region64: #{tpu_custom_call.1} parent=1 // pred_region
      %1395 = dma.done [#allocation9], 1024
    $region65: #{tpu_custom_call.1} parent=1 // pred_fallthru
      _
    %1396 = vsyncpa [#allocation3], 1
    %1397 = vsyncpa [#allocation6], 1
    %1398 = vsyncpa [#allocation4], 1
    %1399 = vsyncpa [#allocation9], 1

</llo_original>
